<compile_context>
chip_gen: v7x
topology: tpu7x:2x2x1
jax: 0.10.0
libtpu: 0.0.40
codegen_flags: <defaults>
</compile_context>

<pallas_src>
import functools

import jax
import jax.numpy as jnp
from jax.experimental import pallas as pl
from jax.experimental.pallas import tpu as pltpu

LN_EPS = 1e-5


def _sgu_kernel(z_ref, w_ref, b_ref, g_ref, bt_ref, o_ref,
                z1_pack, z2n_pack, *, block_n, ch):
    """One grid step over `block_n` n-slices.

    z_ref:   (S, block_n, C)      input block (both halves, C = 2*ch)
    w_ref:   (S, S)               f32 sequence-mixing weight (resident)
    b_ref:   (S, 1)               f32 sequence bias (resident)
    g_ref:   (1, ch), bt_ref: (1, ch)  f32 LayerNorm affine params (resident)
    o_ref:   (S, block_n*ch)      lane-dense output block
    z1_pack / z2n_pack: (S, block_n*ch) f32 VMEM scratch
    """
    g = g_ref[...]
    bt = bt_ref[...]

    # Pack Z1 and LayerNorm(Z2) of every n-slice into lane-dense 2-D slabs.
    for t in range(block_n):                      # static unroll (block_n <= 32)
        cols = slice(t * ch, (t + 1) * ch)
        z1_pack[:, cols] = z_ref[:, t, :ch].astype(jnp.float32)

        z2 = z_ref[:, t, ch:].astype(jnp.float32)                 # (S, ch)
        mean = jnp.mean(z2, axis=-1, keepdims=True)
        cen = z2 - mean
        var = jnp.mean(cen * cen, axis=-1, keepdims=True)
        z2n_pack[:, cols] = cen * jax.lax.rsqrt(var + LN_EPS) * g + bt

    # Sequence mixing: one lane-dense MXU matmul (S, S) @ (S, block_n*ch) + bias.
    mixed = jnp.dot(w_ref[...], z2n_pack[...],
                    preferred_element_type=jnp.float32) + b_ref[...]

    # Gate with Z1 and store the whole lane-dense block at once.
    o_ref[...] = (z1_pack[...] * mixed).astype(o_ref.dtype)


def _pick_block_n(n, s, c, ch, itemsize,
                  max_unroll=32, vmem_budget=6 * 1024 * 1024):
    """Largest per-step n-tile obeying TPU block alignment and a VMEM budget.

    Alignment: for the (S, TN, C) input block the 2nd-minor dim TN must be a
    multiple of 8 or the full N; for the (S, TN*Ch) output block the minor dim
    must be a multiple of 128 or the full N*Ch.
    """
    def aligned(d):
        return ((d == n or d % 8 == 0) and (d == n or (d * ch) % 128 == 0))

    def fits(d):
        in_b = s * d * c * itemsize           # input block (double-buffered)
        out_b = s * d * ch * itemsize         # output block (double-buffered)
        scratch_b = 2 * s * d * ch * 4        # two f32 pack scratches
        return 2 * (in_b + out_b) + scratch_b <= vmem_budget

    cands = [d for d in range(1, n + 1)
             if n % d == 0 and aligned(d) and d <= max_unroll and fits(d)]
    # Fall back to a single block over everything (tiny problems / awkward N).
    return max(cands) if cands else n


def spatial_gating_unit_3d_f(z, weight, bias, gamma, beta):
    """z: [S, B, D, C] with C (= d_z) even. Returns [S, B, D, C // 2]."""
    S, B, D, C = z.shape
    if C % 2 != 0:
        # TODO(synk): odd d_z replication-pad branch (ReplicationPad2d) not implemented.
        raise NotImplementedError("odd d_z is not supported")
    if weight.shape[0] < S or weight.shape[1] < S:
        raise ValueError(f"weight {weight.shape} is smaller than seq_len={S}")
    if bias.shape[0] < S:
        raise ValueError(f"bias {bias.shape} is smaller than seq_len={S}")
    # TODO(synk): optional token-visibility mask (weight * mask) not implemented.

    Ch = C // 2
    N = B * D

    z_v = z.reshape(S, N, C)                        # free reshape, no HBM copy
    # Hoist invariant parameter casts out of the kernel body (tiny arrays).
    w = weight[:S, :S].astype(jnp.float32)
    b = bias[:S].astype(jnp.float32).reshape(S, 1)
    g = gamma.astype(jnp.float32).reshape(1, Ch)
    bt = beta.astype(jnp.float32).reshape(1, Ch)

    tn = _pick_block_n(N, S, C, Ch, z.dtype.itemsize)
    grid = (N // tn,)

    kernel = functools.partial(_sgu_kernel, block_n=tn, ch=Ch)

    out_flat = pl.pallas_call(
        kernel,
        out_shape=jax.ShapeDtypeStruct((S, N * Ch), z.dtype),
        grid_spec=pltpu.PrefetchScalarGridSpec(
            num_scalar_prefetch=0,
            grid=grid,
            in_specs=[
                pl.BlockSpec((S, tn, C), lambda i: (0, i, 0)),   # z (both halves)
                pl.BlockSpec((S, S), lambda i: (0, 0)),          # W   (resident)
                pl.BlockSpec((S, 1), lambda i: (0, 0)),          # bias
                pl.BlockSpec((1, Ch), lambda i: (0, 0)),         # LN gamma
                pl.BlockSpec((1, Ch), lambda i: (0, 0)),         # LN beta
            ],
            out_specs=pl.BlockSpec((S, tn * Ch), lambda i: (0, i)),
            scratch_shapes=[pltpu.VMEM((S, tn * Ch), jnp.float32),
                            pltpu.VMEM((S, tn * Ch), jnp.float32)],
        ),
        compiler_params=pltpu.CompilerParams(
            dimension_semantics=("parallel",)),
    )(z_v, w, b, g, bt)

    return out_flat.reshape(S, B, D, Ch)            # free reshape back


def _reference(z, weight, bias, gamma, beta):
    S = z.shape[0]
    Ch = z.shape[-1] // 2
    z1, z2 = z[..., :Ch], z[..., Ch:]
    z2 = z2.astype(jnp.float32)
    mean = jnp.mean(z2, axis=-1, keepdims=True)
    var = jnp.mean((z2 - mean) ** 2, axis=-1, keepdims=True)
    z2n = (z2 - mean) * jax.lax.rsqrt(var + LN_EPS) * gamma + beta
    mixed = jnp.einsum('ij,jbdc->ibdc', weight[:S, :S], z2n) \
        + bias[:S][:, None, None, None]
    return (z1.astype(jnp.float32) * mixed).astype(z.dtype)


if __name__ == "__main__":
    # Module hyper-params (small): d_z=32 -> Ch=16, seq_len=8, batch=2, d=4
    seq_len, batch, d, d_z = 8, 2, 4, 32
    Ch = d_z // 2

    key = jax.random.PRNGKey(0)
    k_z, k_w = jax.random.split(key)

    z = jax.random.normal(k_z, (seq_len, batch, d, d_z), dtype=jnp.float32)
    # Deterministic parameter init matching __init__:
    weight = jax.random.uniform(k_w, (seq_len, seq_len),
                                minval=-0.01, maxval=0.01, dtype=jnp.float32)
    bias = jnp.ones((seq_len,), dtype=jnp.float32)
    gamma = jnp.ones((Ch,), dtype=jnp.float32)   # LayerNorm weight
    beta = jnp.zeros((Ch,), dtype=jnp.float32)   # LayerNorm bias

    out = jax.block_until_ready(
        spatial_gating_unit_3d_f(z, weight, bias, gamma, beta))
    ref = jax.block_until_ready(_reference(z, weight, bias, gamma, beta))

    assert out.shape == (seq_len, batch, d, Ch)
    assert jnp.allclose(out, ref, atol=1e-5, rtol=1e-5)

    print("KERNEL_OK")
</pallas_src>

<mosaic_0001>
module attributes {stable_mosaic.version = 11 : i64} {
  func.func @_sgu_kernel(%arg0: i32, %arg1: memref<8x8x32xf32, #tpu.memory_space<vmem>>, %arg2: memref<8x8xf32, #tpu.memory_space<vmem>>, %arg3: memref<8x1xf32, #tpu.memory_space<vmem>>, %arg4: memref<1x16xf32, #tpu.memory_space<vmem>>, %arg5: memref<1x16xf32, #tpu.memory_space<vmem>>, %arg6: memref<8x128xf32, #tpu.memory_space<vmem>>, %arg7: memref<8x128xf32, #tpu.memory_space<vmem>>, %arg8: memref<8x128xf32, #tpu.memory_space<vmem>>) attributes {dimension_semantics = [#tpu.dimension_semantics<parallel>], iteration_bounds = array<i64: 1>, scalar_prefetch = 0 : i64, scratch_operands = 2 : i64, tpu.core_type = #tpu.core_type<tc>, window_params = [{transform_indices = @transform_0, window_bounds = array<i64: 8, 8, 32>}, {pipeline_mode = #tpu.pipeline_mode<synchronous>, transform_indices = @transform_1, window_bounds = array<i64: 8, 8>}, {pipeline_mode = #tpu.pipeline_mode<synchronous>, transform_indices = @transform_2, window_bounds = array<i64: 8, 1>}, {pipeline_mode = #tpu.pipeline_mode<synchronous>, transform_indices = @transform_3, window_bounds = array<i64: 1, 16>}, {pipeline_mode = #tpu.pipeline_mode<synchronous>, transform_indices = @transform_4, window_bounds = array<i64: 1, 16>}, {transform_indices = @transform_5, window_bounds = array<i64: 8, 128>}]} {
    %c0 = arith.constant 0 : index
    %c0_0 = arith.constant 0 : index
    %0 = vector.load %arg4[%c0, %c0_0] : memref<1x16xf32, #tpu.memory_space<vmem>>, vector<1x16xf32>
    %c0_1 = arith.constant 0 : index
    %c0_2 = arith.constant 0 : index
    %1 = vector.load %arg5[%c0_1, %c0_2] : memref<1x16xf32, #tpu.memory_space<vmem>>, vector<1x16xf32>
    %c0_3 = arith.constant 0 : index
    %c0_4 = arith.constant 0 : index
    %c0_5 = arith.constant 0 : index
    %2 = vector.load %arg1[%c0_3, %c0_4, %c0_5] : memref<8x8x32xf32, #tpu.memory_space<vmem>>, vector<8x1x16xf32>
    %3 = vector.shape_cast %2 : vector<8x1x16xf32> to vector<8x16xf32>
    %c0_6 = arith.constant 0 : index
    %c0_7 = arith.constant 0 : index
    %4 = vector.load %arg7[%c0_6, %c0_7] : memref<8x128xf32, #tpu.memory_space<vmem>>, vector<8x16xf32>
    tpu.vector_store %arg7[%c0_6, %c0_7], %3 {strides = array<i32>} : memref<8x128xf32, #tpu.memory_space<vmem>>, vector<8x16xf32>,
    %c0_8 = arith.constant 0 : index
    %c0_9 = arith.constant 0 : index
    %c16 = arith.constant 16 : index
    %5 = vector.load %arg1[%c0_8, %c0_9, %c16] : memref<8x8x32xf32, #tpu.memory_space<vmem>>, vector<8x1x16xf32>
    %6 = vector.shape_cast %5 : vector<8x1x16xf32> to vector<8x16xf32>
    %cst = arith.constant dense<0.000000e+00> : vector<8xf32>
    %7 = vector.multi_reduction <add>, %6, %cst [1] : vector<8x16xf32> to vector<8xf32>
    %8 = vector.shape_cast %7 : vector<8xf32> to vector<8x1xf32>
    %cst_10 = arith.constant 1.600000e+01 : f32
    %9 = vector.broadcast %cst_10 : f32 to vector<8x1xf32>
    %10 = arith.divf %8, %9 : vector<8x1xf32>
    %11 = vector.broadcast %10 : vector<8x1xf32> to vector<8x16xf32>
    %12 = arith.subf %6, %11 : vector<8x16xf32>
    %13 = arith.mulf %12, %12 : vector<8x16xf32>
    %cst_11 = arith.constant dense<0.000000e+00> : vector<8xf32>
    %14 = vector.multi_reduction <add>, %13, %cst_11 [1] : vector<8x16xf32> to vector<8xf32>
    %15 = vector.shape_cast %14 : vector<8xf32> to vector<8x1xf32>
    %cst_12 = arith.constant 1.600000e+01 : f32
    %16 = vector.broadcast %cst_12 : f32 to vector<8x1xf32>
    %17 = arith.divf %15, %16 : vector<8x1xf32>
    %cst_13 = arith.constant 9.99999974E-6 : f32
    %18 = vector.broadcast %cst_13 : f32 to vector<8x1xf32>
    %19 = arith.addf %17, %18 : vector<8x1xf32>
    %20 = math.rsqrt %19 : vector<8x1xf32>
    %21 = vector.broadcast %20 : vector<8x1xf32> to vector<8x16xf32>
    %22 = arith.mulf %12, %21 : vector<8x16xf32>
    %23 = vector.broadcast %0 : vector<1x16xf32> to vector<8x16xf32>
    %24 = arith.mulf %22, %23 : vector<8x16xf32>
    %25 = vector.broadcast %1 : vector<1x16xf32> to vector<8x16xf32>
    %26 = arith.addf %24, %25 : vector<8x16xf32>
    %c0_14 = arith.constant 0 : index
    %c0_15 = arith.constant 0 : index
    %27 = vector.load %arg8[%c0_14, %c0_15] : memref<8x128xf32, #tpu.memory_space<vmem>>, vector<8x16xf32>
    tpu.vector_store %arg8[%c0_14, %c0_15], %26 {strides = array<i32>} : memref<8x128xf32, #tpu.memory_space<vmem>>, vector<8x16xf32>,
    %c0_16 = arith.constant 0 : index
    %c1 = arith.constant 1 : index
    %c0_17 = arith.constant 0 : index
    %28 = vector.load %arg1[%c0_16, %c1, %c0_17] : memref<8x8x32xf32, #tpu.memory_space<vmem>>, vector<8x1x16xf32>
    %29 = vector.shape_cast %28 : vector<8x1x16xf32> to vector<8x16xf32>
    %c0_18 = arith.constant 0 : index
    %c16_19 = arith.constant 16 : index
    %30 = vector.load %arg7[%c0_18, %c16_19] : memref<8x128xf32, #tpu.memory_space<vmem>>, vector<8x16xf32>
    tpu.vector_store %arg7[%c0_18, %c16_19], %29 {strides = array<i32>} : memref<8x128xf32, #tpu.memory_space<vmem>>, vector<8x16xf32>,
    %c0_20 = arith.constant 0 : index
    %c1_21 = arith.constant 1 : index
    %c16_22 = arith.constant 16 : index
    %31 = vector.load %arg1[%c0_20, %c1_21, %c16_22] : memref<8x8x32xf32, #tpu.memory_space<vmem>>, vector<8x1x16xf32>
    %32 = vector.shape_cast %31 : vector<8x1x16xf32> to vector<8x16xf32>
    %cst_23 = arith.constant dense<0.000000e+00> : vector<8xf32>
    %33 = vector.multi_reduction <add>, %32, %cst_23 [1] : vector<8x16xf32> to vector<8xf32>
    %34 = vector.shape_cast %33 : vector<8xf32> to vector<8x1xf32>
    %cst_24 = arith.constant 1.600000e+01 : f32
    %35 = vector.broadcast %cst_24 : f32 to vector<8x1xf32>
    %36 = arith.divf %34, %35 : vector<8x1xf32>
    %37 = vector.broadcast %36 : vector<8x1xf32> to vector<8x16xf32>
    %38 = arith.subf %32, %37 : vector<8x16xf32>
    %39 = arith.mulf %38, %38 : vector<8x16xf32>
    %cst_25 = arith.constant dense<0.000000e+00> : vector<8xf32>
    %40 = vector.multi_reduction <add>, %39, %cst_25 [1] : vector<8x16xf32> to vector<8xf32>
    %41 = vector.shape_cast %40 : vector<8xf32> to vector<8x1xf32>
    %cst_26 = arith.constant 1.600000e+01 : f32
    %42 = vector.broadcast %cst_26 : f32 to vector<8x1xf32>
    %43 = arith.divf %41, %42 : vector<8x1xf32>
    %cst_27 = arith.constant 9.99999974E-6 : f32
    %44 = vector.broadcast %cst_27 : f32 to vector<8x1xf32>
    %45 = arith.addf %43, %44 : vector<8x1xf32>
    %46 = math.rsqrt %45 : vector<8x1xf32>
    %47 = vector.broadcast %46 : vector<8x1xf32> to vector<8x16xf32>
    %48 = arith.mulf %38, %47 : vector<8x16xf32>
    %49 = vector.broadcast %0 : vector<1x16xf32> to vector<8x16xf32>
    %50 = arith.mulf %48, %49 : vector<8x16xf32>
    %51 = vector.broadcast %1 : vector<1x16xf32> to vector<8x16xf32>
    %52 = arith.addf %50, %51 : vector<8x16xf32>
    %c0_28 = arith.constant 0 : index
    %c16_29 = arith.constant 16 : index
    %53 = vector.load %arg8[%c0_28, %c16_29] : memref<8x128xf32, #tpu.memory_space<vmem>>, vector<8x16xf32>
    tpu.vector_store %arg8[%c0_28, %c16_29], %52 {strides = array<i32>} : memref<8x128xf32, #tpu.memory_space<vmem>>, vector<8x16xf32>,
    %c0_30 = arith.constant 0 : index
    %c2 = arith.constant 2 : index
    %c0_31 = arith.constant 0 : index
    %54 = vector.load %arg1[%c0_30, %c2, %c0_31] : memref<8x8x32xf32, #tpu.memory_space<vmem>>, vector<8x1x16xf32>
    %55 = vector.shape_cast %54 : vector<8x1x16xf32> to vector<8x16xf32>
    %c0_32 = arith.constant 0 : index
    %c32 = arith.constant 32 : index
    %56 = vector.load %arg7[%c0_32, %c32] : memref<8x128xf32, #tpu.memory_space<vmem>>, vector<8x16xf32>
    tpu.vector_store %arg7[%c0_32, %c32], %55 {strides = array<i32>} : memref<8x128xf32, #tpu.memory_space<vmem>>, vector<8x16xf32>,
    %c0_33 = arith.constant 0 : index
    %c2_34 = arith.constant 2 : index
    %c16_35 = arith.constant 16 : index
    %57 = vector.load %arg1[%c0_33, %c2_34, %c16_35] : memref<8x8x32xf32, #tpu.memory_space<vmem>>, vector<8x1x16xf32>
    %58 = vector.shape_cast %57 : vector<8x1x16xf32> to vector<8x16xf32>
    %cst_36 = arith.constant dense<0.000000e+00> : vector<8xf32>
    %59 = vector.multi_reduction <add>, %58, %cst_36 [1] : vector<8x16xf32> to vector<8xf32>
    %60 = vector.shape_cast %59 : vector<8xf32> to vector<8x1xf32>
    %cst_37 = arith.constant 1.600000e+01 : f32
    %61 = vector.broadcast %cst_37 : f32 to vector<8x1xf32>
    %62 = arith.divf %60, %61 : vector<8x1xf32>
    %63 = vector.broadcast %62 : vector<8x1xf32> to vector<8x16xf32>
    %64 = arith.subf %58, %63 : vector<8x16xf32>
    %65 = arith.mulf %64, %64 : vector<8x16xf32>
    %cst_38 = arith.constant dense<0.000000e+00> : vector<8xf32>
    %66 = vector.multi_reduction <add>, %65, %cst_38 [1] : vector<8x16xf32> to vector<8xf32>
    %67 = vector.shape_cast %66 : vector<8xf32> to vector<8x1xf32>
    %cst_39 = arith.constant 1.600000e+01 : f32
    %68 = vector.broadcast %cst_39 : f32 to vector<8x1xf32>
    %69 = arith.divf %67, %68 : vector<8x1xf32>
    %cst_40 = arith.constant 9.99999974E-6 : f32
    %70 = vector.broadcast %cst_40 : f32 to vector<8x1xf32>
    %71 = arith.addf %69, %70 : vector<8x1xf32>
    %72 = math.rsqrt %71 : vector<8x1xf32>
    %73 = vector.broadcast %72 : vector<8x1xf32> to vector<8x16xf32>
    %74 = arith.mulf %64, %73 : vector<8x16xf32>
    %75 = vector.broadcast %0 : vector<1x16xf32> to vector<8x16xf32>
    %76 = arith.mulf %74, %75 : vector<8x16xf32>
    %77 = vector.broadcast %1 : vector<1x16xf32> to vector<8x16xf32>
    %78 = arith.addf %76, %77 : vector<8x16xf32>
    %c0_41 = arith.constant 0 : index
    %c32_42 = arith.constant 32 : index
    %79 = vector.load %arg8[%c0_41, %c32_42] : memref<8x128xf32, #tpu.memory_space<vmem>>, vector<8x16xf32>
    tpu.vector_store %arg8[%c0_41, %c32_42], %78 {strides = array<i32>} : memref<8x128xf32, #tpu.memory_space<vmem>>, vector<8x16xf32>,
    %c0_43 = arith.constant 0 : index
    %c3 = arith.constant 3 : index
    %c0_44 = arith.constant 0 : index
    %80 = vector.load %arg1[%c0_43, %c3, %c0_44] : memref<8x8x32xf32, #tpu.memory_space<vmem>>, vector<8x1x16xf32>
    %81 = vector.shape_cast %80 : vector<8x1x16xf32> to vector<8x16xf32>
    %c0_45 = arith.constant 0 : index
    %c48 = arith.constant 48 : index
    %82 = vector.load %arg7[%c0_45, %c48] : memref<8x128xf32, #tpu.memory_space<vmem>>, vector<8x16xf32>
    tpu.vector_store %arg7[%c0_45, %c48], %81 {strides = array<i32>} : memref<8x128xf32, #tpu.memory_space<vmem>>, vector<8x16xf32>,
    %c0_46 = arith.constant 0 : index
    %c3_47 = arith.constant 3 : index
    %c16_48 = arith.constant 16 : index
    %83 = vector.load %arg1[%c0_46, %c3_47, %c16_48] : memref<8x8x32xf32, #tpu.memory_space<vmem>>, vector<8x1x16xf32>
    %84 = vector.shape_cast %83 : vector<8x1x16xf32> to vector<8x16xf32>
    %cst_49 = arith.constant dense<0.000000e+00> : vector<8xf32>
    %85 = vector.multi_reduction <add>, %84, %cst_49 [1] : vector<8x16xf32> to vector<8xf32>
    %86 = vector.shape_cast %85 : vector<8xf32> to vector<8x1xf32>
    %cst_50 = arith.constant 1.600000e+01 : f32
    %87 = vector.broadcast %cst_50 : f32 to vector<8x1xf32>
    %88 = arith.divf %86, %87 : vector<8x1xf32>
    %89 = vector.broadcast %88 : vector<8x1xf32> to vector<8x16xf32>
    %90 = arith.subf %84, %89 : vector<8x16xf32>
    %91 = arith.mulf %90, %90 : vector<8x16xf32>
    %cst_51 = arith.constant dense<0.000000e+00> : vector<8xf32>
    %92 = vector.multi_reduction <add>, %91, %cst_51 [1] : vector<8x16xf32> to vector<8xf32>
    %93 = vector.shape_cast %92 : vector<8xf32> to vector<8x1xf32>
    %cst_52 = arith.constant 1.600000e+01 : f32
    %94 = vector.broadcast %cst_52 : f32 to vector<8x1xf32>
    %95 = arith.divf %93, %94 : vector<8x1xf32>
    %cst_53 = arith.constant 9.99999974E-6 : f32
    %96 = vector.broadcast %cst_53 : f32 to vector<8x1xf32>
    %97 = arith.addf %95, %96 : vector<8x1xf32>
    %98 = math.rsqrt %97 : vector<8x1xf32>
    %99 = vector.broadcast %98 : vector<8x1xf32> to vector<8x16xf32>
    %100 = arith.mulf %90, %99 : vector<8x16xf32>
    %101 = vector.broadcast %0 : vector<1x16xf32> to vector<8x16xf32>
    %102 = arith.mulf %100, %101 : vector<8x16xf32>
    %103 = vector.broadcast %1 : vector<1x16xf32> to vector<8x16xf32>
    %104 = arith.addf %102, %103 : vector<8x16xf32>
    %c0_54 = arith.constant 0 : index
    %c48_55 = arith.constant 48 : index
    %105 = vector.load %arg8[%c0_54, %c48_55] : memref<8x128xf32, #tpu.memory_space<vmem>>, vector<8x16xf32>
    tpu.vector_store %arg8[%c0_54, %c48_55], %104 {strides = array<i32>} : memref<8x128xf32, #tpu.memory_space<vmem>>, vector<8x16xf32>,
    %c0_56 = arith.constant 0 : index
    %c4 = arith.constant 4 : index
    %c0_57 = arith.constant 0 : index
    %106 = vector.load %arg1[%c0_56, %c4, %c0_57] : memref<8x8x32xf32, #tpu.memory_space<vmem>>, vector<8x1x16xf32>
    %107 = vector.shape_cast %106 : vector<8x1x16xf32> to vector<8x16xf32>
    %c0_58 = arith.constant 0 : index
    %c64 = arith.constant 64 : index
    %108 = vector.load %arg7[%c0_58, %c64] : memref<8x128xf32, #tpu.memory_space<vmem>>, vector<8x16xf32>
    tpu.vector_store %arg7[%c0_58, %c64], %107 {strides = array<i32>} : memref<8x128xf32, #tpu.memory_space<vmem>>, vector<8x16xf32>,
    %c0_59 = arith.constant 0 : index
    %c4_60 = arith.constant 4 : index
    %c16_61 = arith.constant 16 : index
    %109 = vector.load %arg1[%c0_59, %c4_60, %c16_61] : memref<8x8x32xf32, #tpu.memory_space<vmem>>, vector<8x1x16xf32>
    %110 = vector.shape_cast %109 : vector<8x1x16xf32> to vector<8x16xf32>
    %cst_62 = arith.constant dense<0.000000e+00> : vector<8xf32>
    %111 = vector.multi_reduction <add>, %110, %cst_62 [1] : vector<8x16xf32> to vector<8xf32>
    %112 = vector.shape_cast %111 : vector<8xf32> to vector<8x1xf32>
    %cst_63 = arith.constant 1.600000e+01 : f32
    %113 = vector.broadcast %cst_63 : f32 to vector<8x1xf32>
    %114 = arith.divf %112, %113 : vector<8x1xf32>
    %115 = vector.broadcast %114 : vector<8x1xf32> to vector<8x16xf32>
    %116 = arith.subf %110, %115 : vector<8x16xf32>
    %117 = arith.mulf %116, %116 : vector<8x16xf32>
    %cst_64 = arith.constant dense<0.000000e+00> : vector<8xf32>
    %118 = vector.multi_reduction <add>, %117, %cst_64 [1] : vector<8x16xf32> to vector<8xf32>
    %119 = vector.shape_cast %118 : vector<8xf32> to vector<8x1xf32>
    %cst_65 = arith.constant 1.600000e+01 : f32
    %120 = vector.broadcast %cst_65 : f32 to vector<8x1xf32>
    %121 = arith.divf %119, %120 : vector<8x1xf32>
    %cst_66 = arith.constant 9.99999974E-6 : f32
    %122 = vector.broadcast %cst_66 : f32 to vector<8x1xf32>
    %123 = arith.addf %121, %122 : vector<8x1xf32>
    %124 = math.rsqrt %123 : vector<8x1xf32>
    %125 = vector.broadcast %124 : vector<8x1xf32> to vector<8x16xf32>
    %126 = arith.mulf %116, %125 : vector<8x16xf32>
    %127 = vector.broadcast %0 : vector<1x16xf32> to vector<8x16xf32>
    %128 = arith.mulf %126, %127 : vector<8x16xf32>
    %129 = vector.broadcast %1 : vector<1x16xf32> to vector<8x16xf32>
    %130 = arith.addf %128, %129 : vector<8x16xf32>
    %c0_67 = arith.constant 0 : index
    %c64_68 = arith.constant 64 : index
    %131 = vector.load %arg8[%c0_67, %c64_68] : memref<8x128xf32, #tpu.memory_space<vmem>>, vector<8x16xf32>
    tpu.vector_store %arg8[%c0_67, %c64_68], %130 {strides = array<i32>} : memref<8x128xf32, #tpu.memory_space<vmem>>, vector<8x16xf32>,
    %c0_69 = arith.constant 0 : index
    %c5 = arith.constant 5 : index
    %c0_70 = arith.constant 0 : index
    %132 = vector.load %arg1[%c0_69, %c5, %c0_70] : memref<8x8x32xf32, #tpu.memory_space<vmem>>, vector<8x1x16xf32>
    %133 = vector.shape_cast %132 : vector<8x1x16xf32> to vector<8x16xf32>
    %c0_71 = arith.constant 0 : index
    %c80 = arith.constant 80 : index
    %134 = vector.load %arg7[%c0_71, %c80] : memref<8x128xf32, #tpu.memory_space<vmem>>, vector<8x16xf32>
    tpu.vector_store %arg7[%c0_71, %c80], %133 {strides = array<i32>} : memref<8x128xf32, #tpu.memory_space<vmem>>, vector<8x16xf32>,
    %c0_72 = arith.constant 0 : index
    %c5_73 = arith.constant 5 : index
    %c16_74 = arith.constant 16 : index
    %135 = vector.load %arg1[%c0_72, %c5_73, %c16_74] : memref<8x8x32xf32, #tpu.memory_space<vmem>>, vector<8x1x16xf32>
    %136 = vector.shape_cast %135 : vector<8x1x16xf32> to vector<8x16xf32>
    %cst_75 = arith.constant dense<0.000000e+00> : vector<8xf32>
    %137 = vector.multi_reduction <add>, %136, %cst_75 [1] : vector<8x16xf32> to vector<8xf32>
    %138 = vector.shape_cast %137 : vector<8xf32> to vector<8x1xf32>
    %cst_76 = arith.constant 1.600000e+01 : f32
    %139 = vector.broadcast %cst_76 : f32 to vector<8x1xf32>
    %140 = arith.divf %138, %139 : vector<8x1xf32>
    %141 = vector.broadcast %140 : vector<8x1xf32> to vector<8x16xf32>
    %142 = arith.subf %136, %141 : vector<8x16xf32>
    %143 = arith.mulf %142, %142 : vector<8x16xf32>
    %cst_77 = arith.constant dense<0.000000e+00> : vector<8xf32>
    %144 = vector.multi_reduction <add>, %143, %cst_77 [1] : vector<8x16xf32> to vector<8xf32>
    %145 = vector.shape_cast %144 : vector<8xf32> to vector<8x1xf32>
    %cst_78 = arith.constant 1.600000e+01 : f32
    %146 = vector.broadcast %cst_78 : f32 to vector<8x1xf32>
    %147 = arith.divf %145, %146 : vector<8x1xf32>
    %cst_79 = arith.constant 9.99999974E-6 : f32
    %148 = vector.broadcast %cst_79 : f32 to vector<8x1xf32>
    %149 = arith.addf %147, %148 : vector<8x1xf32>
    %150 = math.rsqrt %149 : vector<8x1xf32>
    %151 = vector.broadcast %150 : vector<8x1xf32> to vector<8x16xf32>
    %152 = arith.mulf %142, %151 : vector<8x16xf32>
    %153 = vector.broadcast %0 : vector<1x16xf32> to vector<8x16xf32>
    %154 = arith.mulf %152, %153 : vector<8x16xf32>
    %155 = vector.broadcast %1 : vector<1x16xf32> to vector<8x16xf32>
    %156 = arith.addf %154, %155 : vector<8x16xf32>
    %c0_80 = arith.constant 0 : index
    %c80_81 = arith.constant 80 : index
    %157 = vector.load %arg8[%c0_80, %c80_81] : memref<8x128xf32, #tpu.memory_space<vmem>>, vector<8x16xf32>
    tpu.vector_store %arg8[%c0_80, %c80_81], %156 {strides = array<i32>} : memref<8x128xf32, #tpu.memory_space<vmem>>, vector<8x16xf32>,
    %c0_82 = arith.constant 0 : index
    %c6 = arith.constant 6 : index
    %c0_83 = arith.constant 0 : index
    %158 = vector.load %arg1[%c0_82, %c6, %c0_83] : memref<8x8x32xf32, #tpu.memory_space<vmem>>, vector<8x1x16xf32>
    %159 = vector.shape_cast %158 : vector<8x1x16xf32> to vector<8x16xf32>
    %c0_84 = arith.constant 0 : index
    %c96 = arith.constant 96 : index
    %160 = vector.load %arg7[%c0_84, %c96] : memref<8x128xf32, #tpu.memory_space<vmem>>, vector<8x16xf32>
    tpu.vector_store %arg7[%c0_84, %c96], %159 {strides = array<i32>} : memref<8x128xf32, #tpu.memory_space<vmem>>, vector<8x16xf32>,
    %c0_85 = arith.constant 0 : index
    %c6_86 = arith.constant 6 : index
    %c16_87 = arith.constant 16 : index
    %161 = vector.load %arg1[%c0_85, %c6_86, %c16_87] : memref<8x8x32xf32, #tpu.memory_space<vmem>>, vector<8x1x16xf32>
    %162 = vector.shape_cast %161 : vector<8x1x16xf32> to vector<8x16xf32>
    %cst_88 = arith.constant dense<0.000000e+00> : vector<8xf32>
    %163 = vector.multi_reduction <add>, %162, %cst_88 [1] : vector<8x16xf32> to vector<8xf32>
    %164 = vector.shape_cast %163 : vector<8xf32> to vector<8x1xf32>
    %cst_89 = arith.constant 1.600000e+01 : f32
    %165 = vector.broadcast %cst_89 : f32 to vector<8x1xf32>
    %166 = arith.divf %164, %165 : vector<8x1xf32>
    %167 = vector.broadcast %166 : vector<8x1xf32> to vector<8x16xf32>
    %168 = arith.subf %162, %167 : vector<8x16xf32>
    %169 = arith.mulf %168, %168 : vector<8x16xf32>
    %cst_90 = arith.constant dense<0.000000e+00> : vector<8xf32>
    %170 = vector.multi_reduction <add>, %169, %cst_90 [1] : vector<8x16xf32> to vector<8xf32>
    %171 = vector.shape_cast %170 : vector<8xf32> to vector<8x1xf32>
    %cst_91 = arith.constant 1.600000e+01 : f32
    %172 = vector.broadcast %cst_91 : f32 to vector<8x1xf32>
    %173 = arith.divf %171, %172 : vector<8x1xf32>
    %cst_92 = arith.constant 9.99999974E-6 : f32
    %174 = vector.broadcast %cst_92 : f32 to vector<8x1xf32>
    %175 = arith.addf %173, %174 : vector<8x1xf32>
    %176 = math.rsqrt %175 : vector<8x1xf32>
    %177 = vector.broadcast %176 : vector<8x1xf32> to vector<8x16xf32>
    %178 = arith.mulf %168, %177 : vector<8x16xf32>
    %179 = vector.broadcast %0 : vector<1x16xf32> to vector<8x16xf32>
    %180 = arith.mulf %178, %179 : vector<8x16xf32>
    %181 = vector.broadcast %1 : vector<1x16xf32> to vector<8x16xf32>
    %182 = arith.addf %180, %181 : vector<8x16xf32>
    %c0_93 = arith.constant 0 : index
    %c96_94 = arith.constant 96 : index
    %183 = vector.load %arg8[%c0_93, %c96_94] : memref<8x128xf32, #tpu.memory_space<vmem>>, vector<8x16xf32>
    tpu.vector_store %arg8[%c0_93, %c96_94], %182 {strides = array<i32>} : memref<8x128xf32, #tpu.memory_space<vmem>>, vector<8x16xf32>,
    %c0_95 = arith.constant 0 : index
    %c7 = arith.constant 7 : index
    %c0_96 = arith.constant 0 : index
    %184 = vector.load %arg1[%c0_95, %c7, %c0_96] : memref<8x8x32xf32, #tpu.memory_space<vmem>>, vector<8x1x16xf32>
    %185 = vector.shape_cast %184 : vector<8x1x16xf32> to vector<8x16xf32>
    %c0_97 = arith.constant 0 : index
    %c112 = arith.constant 112 : index
    %186 = vector.load %arg7[%c0_97, %c112] : memref<8x128xf32, #tpu.memory_space<vmem>>, vector<8x16xf32>
    tpu.vector_store %arg7[%c0_97, %c112], %185 {strides = array<i32>} : memref<8x128xf32, #tpu.memory_space<vmem>>, vector<8x16xf32>,
    %c0_98 = arith.constant 0 : index
    %c7_99 = arith.constant 7 : index
    %c16_100 = arith.constant 16 : index
    %187 = vector.load %arg1[%c0_98, %c7_99, %c16_100] : memref<8x8x32xf32, #tpu.memory_space<vmem>>, vector<8x1x16xf32>
    %188 = vector.shape_cast %187 : vector<8x1x16xf32> to vector<8x16xf32>
    %cst_101 = arith.constant dense<0.000000e+00> : vector<8xf32>
    %189 = vector.multi_reduction <add>, %188, %cst_101 [1] : vector<8x16xf32> to vector<8xf32>
    %190 = vector.shape_cast %189 : vector<8xf32> to vector<8x1xf32>
    %cst_102 = arith.constant 1.600000e+01 : f32
    %191 = vector.broadcast %cst_102 : f32 to vector<8x1xf32>
    %192 = arith.divf %190, %191 : vector<8x1xf32>
    %193 = vector.broadcast %192 : vector<8x1xf32> to vector<8x16xf32>
    %194 = arith.subf %188, %193 : vector<8x16xf32>
    %195 = arith.mulf %194, %194 : vector<8x16xf32>
    %cst_103 = arith.constant dense<0.000000e+00> : vector<8xf32>
    %196 = vector.multi_reduction <add>, %195, %cst_103 [1] : vector<8x16xf32> to vector<8xf32>
    %197 = vector.shape_cast %196 : vector<8xf32> to vector<8x1xf32>
    %cst_104 = arith.constant 1.600000e+01 : f32
    %198 = vector.broadcast %cst_104 : f32 to vector<8x1xf32>
    %199 = arith.divf %197, %198 : vector<8x1xf32>
    %cst_105 = arith.constant 9.99999974E-6 : f32
    %200 = vector.broadcast %cst_105 : f32 to vector<8x1xf32>
    %201 = arith.addf %199, %200 : vector<8x1xf32>
    %202 = math.rsqrt %201 : vector<8x1xf32>
    %203 = vector.broadcast %202 : vector<8x1xf32> to vector<8x16xf32>
    %204 = arith.mulf %194, %203 : vector<8x16xf32>
    %205 = vector.broadcast %0 : vector<1x16xf32> to vector<8x16xf32>
    %206 = arith.mulf %204, %205 : vector<8x16xf32>
    %207 = vector.broadcast %1 : vector<1x16xf32> to vector<8x16xf32>
    %208 = arith.addf %206, %207 : vector<8x16xf32>
    %c0_106 = arith.constant 0 : index
    %c112_107 = arith.constant 112 : index
    %209 = vector.load %arg8[%c0_106, %c112_107] : memref<8x128xf32, #tpu.memory_space<vmem>>, vector<8x16xf32>
    tpu.vector_store %arg8[%c0_106, %c112_107], %208 {strides = array<i32>} : memref<8x128xf32, #tpu.memory_space<vmem>>, vector<8x16xf32>,
    %c0_108 = arith.constant 0 : index
    %c0_109 = arith.constant 0 : index
    %210 = vector.load %arg2[%c0_108, %c0_109] : memref<8x8xf32, #tpu.memory_space<vmem>>, vector<8x8xf32>
    %c0_110 = arith.constant 0 : index
    %c0_111 = arith.constant 0 : index
    %211 = vector.load %arg8[%c0_110, %c0_111] : memref<8x128xf32, #tpu.memory_space<vmem>>, vector<8x128xf32>
    %cst_112 = arith.constant dense<0.000000e+00> : vector<8x128xf32>
    %212 = tpu.matmul %210, %211, %cst_112 {dimension_numbers = #tpu.dot_dimension_numbers<[1], [0], [0], [1], [0, 0, 1, 1], [], []>} : vector<8x8xf32>, vector<8x128xf32>, vector<8x128xf32> -> vector<8x128xf32>
    %c0_113 = arith.constant 0 : index
    %c0_114 = arith.constant 0 : index
    %213 = vector.load %arg3[%c0_113, %c0_114] : memref<8x1xf32, #tpu.memory_space<vmem>>, vector<8x1xf32>
    %214 = vector.broadcast %213 : vector<8x1xf32> to vector<8x128xf32>
    %215 = arith.addf %212, %214 : vector<8x128xf32>
    %c0_115 = arith.constant 0 : index
    %c0_116 = arith.constant 0 : index
    %216 = vector.load %arg7[%c0_115, %c0_116] : memref<8x128xf32, #tpu.memory_space<vmem>>, vector<8x128xf32>
    %217 = arith.mulf %216, %215 : vector<8x128xf32>
    %c0_117 = arith.constant 0 : index
    %c0_118 = arith.constant 0 : index
    %218 = vector.load %arg6[%c0_117, %c0_118] : memref<8x128xf32, #tpu.memory_space<vmem>>, vector<8x128xf32>
    tpu.vector_store %arg6[%c0_117, %c0_118], %217 {strides = array<i32>} : memref<8x128xf32, #tpu.memory_space<vmem>>, vector<8x128xf32>,
    return
  }
  func.func @transform_0(%arg0: i32) -> (i32, i32, i32) {
    %c0_i32 = arith.constant 0 : i32
    %c0_i32_0 = arith.constant 0 : i32
    %c0_i32_1 = arith.constant 0 : i32
    return %c0_i32, %arg0, %c0_i32_0 : i32, i32, i32
  }
  func.func @transform_1(%arg0: i32) -> (i32, i32) {
    %c0_i32 = arith.constant 0 : i32
    %c0_i32_0 = arith.constant 0 : i32
    %c0_i32_1 = arith.constant 0 : i32
    return %c0_i32, %c0_i32_0 : i32, i32
  }
  func.func @transform_2(%arg0: i32) -> (i32, i32) {
    %c0_i32 = arith.constant 0 : i32
    %c0_i32_0 = arith.constant 0 : i32
    %c0_i32_1 = arith.constant 0 : i32
    return %c0_i32, %c0_i32_0 : i32, i32
  }
  func.func @transform_3(%arg0: i32) -> (i32, i32) {
    %c0_i32 = arith.constant 0 : i32
    %c0_i32_0 = arith.constant 0 : i32
    %c0_i32_1 = arith.constant 0 : i32
    return %c0_i32, %c0_i32_0 : i32, i32
  }
  func.func @transform_4(%arg0: i32) -> (i32, i32) {
    %c0_i32 = arith.constant 0 : i32
    %c0_i32_0 = arith.constant 0 : i32
    %c0_i32_1 = arith.constant 0 : i32
    return %c0_i32, %c0_i32_0 : i32, i32
  }
  func.func @transform_5(%arg0: i32) -> (i32, i32) {
    %c0_i32 = arith.constant 0 : i32
    %c0_i32_0 = arith.constant 0 : i32
    return %c0_i32, %arg0 : i32, i32
  }
}

</mosaic_0001>

<llo_original>
// kernel: tpu_custom_call.1
$region0: #{tpu_custom_call.1}
  #allocation0 [shape = 'u32[]', space=smem, size = 0x4, offset = 0x4, fixed_abs, tag = 'smem constant byte address 0x4 - core index']
  #allocation1 [shape = 'u32[144,128]{1,0:T(1,128)}', space=vmem, size = 0x12000, scoped, tag = 'internal scratch']
  #allocation2 [shape = 'f32[8,128]{1,0:T(8,128)}', space=vmem, size = 0x1000, scoped, tag = 'scratch operand']
  #allocation3 [shape = 'f32[8,128]{1,0:T(8,128)}', space=vmem, size = 0x1000, scoped, tag = 'scratch operand']
  %s0 = inlined_call_operand.hbm [shape: f32[8,8,32], index: 0, kind: input, shape index: {}]
  %s1 = inlined_call_operand.vmem [shape: f32[8,8], index: 1, kind: input, shape index: {}]
  %s2 = inlined_call_operand.vmem [shape: f32[8,1], index: 2, kind: input, shape index: {}]
  %s3 = inlined_call_operand.vmem [shape: f32[1,16], index: 3, kind: input, shape index: {}]
  %s4 = inlined_call_operand.vmem [shape: f32[1,16], index: 4, kind: input, shape index: {}]
  %s5 = inlined_call_operand.hbm [shape: f32[8,128], index: 5, kind: output, shape index: {}]
  %s6 = sld [smem:[#allocation0]]
  $region34: #{tpu_custom_call.1} parent=0
    _
  %s8 = ssub.s32 1, %s6
  %s9 = scalar_select 0, %s8, %s6
  $region1: #{tpu_custom_call.1} parent=0
    #allocation4 [shape = 'u8[32768]{0}', space=vmem, size = 0x8000, scoped, tag = 'input window, operand 0, single buffered']
    #allocation5 [shape = 's32[1]{0}', space=sflag, size = 0x4, scoped, tag = 'scoped memory for tpu_custom_call.1']
    #allocation6 [shape = 's32[1]{0}', space=sflag, size = 0x4, scoped, tag = 'scoped memory for tpu_custom_call.1']
    #allocation7 [shape = 'u8[4096]{0}', space=vmem, size = 0x1000, scoped, tag = 'output window, operand 0, single buffered']
    %10 = vsyncpa [#allocation5], 0
    %11 = vsyncpa [#allocation6], 0
    // Predicated region
    $region2: #{tpu_custom_call.1} parent=1 // pred_check
      _
    $region3: #{tpu_custom_call.1} parent=1 // pred_check_branch
      %13 = sbr.rel (0) target = $region5
    $region4: #{tpu_custom_call.1} parent=1 // pred_region
      %s15 = ssub.s32 1024, 1024
      %16 = vsyncadd [#allocation5], %s15
      %s17 = sshll.u32 [#allocation4], 4
      %s18 = int_to_ptr.vmem [resolvable:$true] %s17
      %23 = dma.hbm_to_vmem [thread:$0]  %s0, 1024, %s18, [#allocation5], 128, 128, 8
    $region5: #{tpu_custom_call.1} parent=1 // pred_fallthru
      _
    // Predicated region
    $region6: #{tpu_custom_call.1} parent=1 // pred_check
      _
    $region7: #{tpu_custom_call.1} parent=1 // pred_check_branch
      %25 = sbr.rel (0) target = $region9
    $region8: #{tpu_custom_call.1} parent=1 // pred_region
      _
    $region9: #{tpu_custom_call.1} parent=1 // pred_fallthru
      _
    // Predicated region
    $region10: #{tpu_custom_call.1} parent=1 // pred_check
      _
    $region11: #{tpu_custom_call.1} parent=1 // pred_check_branch
      %27 = sbr.rel (0) target = $region13
    $region12: #{tpu_custom_call.1} parent=1 // pred_region
      _
    $region13: #{tpu_custom_call.1} parent=1 // pred_fallthru
      _
    // Predicated region
    $region14: #{tpu_custom_call.1} parent=1 // pred_check
      _
    $region15: #{tpu_custom_call.1} parent=1 // pred_check_branch
      %29 = sbr.rel (0) target = $region17
    $region16: #{tpu_custom_call.1} parent=1 // pred_region
      _
    $region17: #{tpu_custom_call.1} parent=1 // pred_fallthru
      _
    // Predicated region
    $region18: #{tpu_custom_call.1} parent=1 // pred_check
      _
    $region19: #{tpu_custom_call.1} parent=1 // pred_check_branch
      %31 = sbr.rel (0) target = $region21
    $region20: #{tpu_custom_call.1} parent=1 // pred_region
      _
    $region21: #{tpu_custom_call.1} parent=1 // pred_fallthru
      _
    // Predicated region
    $region22: #{tpu_custom_call.1} parent=1 // pred_check
      _
    $region23: #{tpu_custom_call.1} parent=1 // pred_check_branch
      %33 = sbr.rel (0) target = $region25
    $region24: #{tpu_custom_call.1} parent=1 // pred_region
      %34 = dma.done [#allocation5], 1024
    $region25: #{tpu_custom_call.1} parent=1 // pred_fallthru
      _
    %v35 = vld [vmem:[%s3] sm:$0x1]
    %v36 = vld [vmem:[%s4] sm:$0x1]
    %v37 = vld [vmem:[#allocation4] sm:$0x1]
    %v38 = vld [vmem:[#allocation4 + $0x8] sm:$0x1]
    %v39 = vld [vmem:[#allocation4 + $0x10] sm:$0x1]
    %v40 = vld [vmem:[#allocation4 + $0x18] sm:$0x1]
    %v41 = vld [vmem:[#allocation4 + $0x20] sm:$0x1]
    %v42 = vld [vmem:[#allocation4 + $0x28] sm:$0x1]
    %v43 = vld [vmem:[#allocation4 + $0x30] sm:$0x1]
    %v44 = vld [vmem:[#allocation4 + $0x38] sm:$0x1]
    %v53 = vrot.slane %v38, 7
    %vm54 = vcmask 1041409
    %v55 = vsel %vm54, %v53, %v37
    %v56 = vrot.slane %v39, 6
    %vm57 = vcmask 1042434
    %v58 = vsel %vm57, %v56, %v55
    %v59 = vrot.slane %v40, 5
    %vm60 = vcmask 1043459
    %v61 = vsel %vm60, %v59, %v58
    %v62 = vrot.slane %v41, 4
    %vm63 = vcmask 1044484
    %v64 = vsel %vm63, %v62, %v61
    %v65 = vrot.slane %v42, 3
    %vm66 = vcmask 1045509
    %v67 = vsel %vm66, %v65, %v64
    %v68 = vrot.slane %v43, 2
    %vm69 = vcmask 1046534
    %v70 = vsel %vm69, %v68, %v67
    %v71 = vrot.slane %v44, 1
    %vm72 = vcmask 1047559
    %v73 = vsel %vm72, %v71, %v70
    %vm75 = vcmask 130048
    %76 = vst.msk [vmem:[#allocation2] sm:$0xff] %vm75, %v73
    %v77 = vld [vmem:[#allocation4] sm:$0x1]
    %v78 = vld [vmem:[#allocation4 + $0x8] sm:$0x1]
    %v79 = vld [vmem:[#allocation4 + $0x10] sm:$0x1]
    %v80 = vld [vmem:[#allocation4 + $0x18] sm:$0x1]
    %v81 = vld [vmem:[#allocation4 + $0x20] sm:$0x1]
    %v82 = vld [vmem:[#allocation4 + $0x28] sm:$0x1]
    %v83 = vld [vmem:[#allocation4 + $0x30] sm:$0x1]
    %v84 = vld [vmem:[#allocation4 + $0x38] sm:$0x1]
    %v93 = vrot.slane %v78, 7
    %v94 = vsel %vm54, %v93, %v77
    %v95 = vrot.slane %v79, 6
    %v96 = vsel %vm57, %v95, %v94
    %v97 = vrot.slane %v80, 5
    %v98 = vsel %vm60, %v97, %v96
    %v99 = vrot.slane %v81, 4
    %v100 = vsel %vm63, %v99, %v98
    %v101 = vrot.slane %v82, 3
    %v102 = vsel %vm66, %v101, %v100
    %v103 = vrot.slane %v83, 2
    %v104 = vsel %vm69, %v103, %v102
    %v105 = vrot.slane %v84, 1
    %v106 = vsel %vm72, %v105, %v104
    %107 = vrot.lane.b32.xlu0 %v106, 112
    %v108 = vpop.permute.xlu0 %107
    %v110 = vsel %vm75, %v108, 0.0
    %111 = vadd.xlane.f32.xlu0 %v110
    %v112 = vpop.xlane.xlu0 %111
    %v113 = vrcp.pop 16.0
    %v114 = vmul.f32 %v112, %v113
    %v116 = vrot.slane %v114, 1
    %v117 = vrot.slane %v114, 2
    %v118 = vrot.slane %v114, 3
    %v119 = vrot.slane %v114, 4
    %v120 = vrot.slane %v114, 5
    %v121 = vrot.slane %v114, 6
    %v122 = vrot.slane %v114, 7
    %v131 = vsub.f32 %v77, %v114
    %v132 = vsub.f32 %v78, %v116
    %v133 = vsub.f32 %v79, %v117
    %v134 = vsub.f32 %v80, %v118
    %v135 = vsub.f32 %v81, %v119
    %v136 = vsub.f32 %v82, %v120
    %v137 = vsub.f32 %v83, %v121
    %v138 = vsub.f32 %v84, %v122
    %v139 = vmul.f32 %v131, %v131
    %v140 = vmul.f32 %v132, %v132
    %v141 = vmul.f32 %v133, %v133
    %v142 = vmul.f32 %v134, %v134
    %v143 = vmul.f32 %v135, %v135
    %v144 = vmul.f32 %v136, %v136
    %v145 = vmul.f32 %v137, %v137
    %v146 = vmul.f32 %v138, %v138
    %v155 = vrot.slane %v140, 7
    %v156 = vsel %vm54, %v155, %v139
    %v157 = vrot.slane %v141, 6
    %v158 = vsel %vm57, %v157, %v156
    %v159 = vrot.slane %v142, 5
    %v160 = vsel %vm60, %v159, %v158
    %v161 = vrot.slane %v143, 4
    %v162 = vsel %vm63, %v161, %v160
    %v163 = vrot.slane %v144, 3
    %v164 = vsel %vm66, %v163, %v162
    %v165 = vrot.slane %v145, 2
    %v166 = vsel %vm69, %v165, %v164
    %v167 = vrot.slane %v146, 1
    %v168 = vsel %vm72, %v167, %v166
    %169 = vrot.lane.b32.xlu0 %v168, 112
    %v170 = vpop.permute.xlu0 %169
    %v172 = vsel %vm75, %v170, 0.0
    %173 = vadd.xlane.f32.xlu0 %v172
    %v174 = vpop.xlane.xlu0 %173
    %v175 = vmul.f32 %v174, %v113
    %v176 = vadd.f32 %v175, 1e-05
    %v177 = vrsqrt.pop %v176
    %v179 = vrot.slane %v177, 1
    %v180 = vrot.slane %v177, 2
    %v181 = vrot.slane %v177, 3
    %v182 = vrot.slane %v177, 4
    %v183 = vrot.slane %v177, 5
    %v184 = vrot.slane %v177, 6
    %v185 = vrot.slane %v177, 7
    %v194 = vmul.f32 %v131, %v177
    %v195 = vmul.f32 %v132, %v179
    %v196 = vmul.f32 %v133, %v180
    %v197 = vmul.f32 %v134, %v181
    %v198 = vmul.f32 %v135, %v182
    %v199 = vmul.f32 %v136, %v183
    %v200 = vmul.f32 %v137, %v184
    %v201 = vmul.f32 %v138, %v185
    %v203 = vlaneseq
    %v204 = vshrl.u32 %v203, 7
    %v205 = vsub.s32 0, %v204
    %v206 = vrot.slane %v35, %v205
    %207 = vrot.lane.b32.xlu0 %v206, 16
    %v208 = vpop.permute.xlu0 %207
    %v210 = vmul.f32 %v194, %v208
    %v211 = vmul.f32 %v195, %v208
    %v212 = vmul.f32 %v196, %v208
    %v213 = vmul.f32 %v197, %v208
    %v214 = vmul.f32 %v198, %v208
    %v215 = vmul.f32 %v199, %v208
    %v216 = vmul.f32 %v200, %v208
    %v217 = vmul.f32 %v201, %v208
    %v219 = vlaneseq
    %v220 = vshrl.u32 %v219, 7
    %v221 = vsub.s32 0, %v220
    %v222 = vrot.slane %v36, %v221
    %223 = vrot.lane.b32.xlu0 %v222, 16
    %v224 = vpop.permute.xlu0 %223
    %v226 = vadd.f32 %v210, %v224
    %v227 = vadd.f32 %v211, %v224
    %v228 = vadd.f32 %v212, %v224
    %v229 = vadd.f32 %v213, %v224
    %v230 = vadd.f32 %v214, %v224
    %v231 = vadd.f32 %v215, %v224
    %v232 = vadd.f32 %v216, %v224
    %v233 = vadd.f32 %v217, %v224
    %v242 = vrot.slane %v227, 7
    %v243 = vsel %vm54, %v242, %v226
    %v244 = vrot.slane %v228, 6
    %v245 = vsel %vm57, %v244, %v243
    %v246 = vrot.slane %v229, 5
    %v247 = vsel %vm60, %v246, %v245
    %v248 = vrot.slane %v230, 4
    %v249 = vsel %vm63, %v248, %v247
    %v250 = vrot.slane %v231, 3
    %v251 = vsel %vm66, %v250, %v249
    %v252 = vrot.slane %v232, 2
    %v253 = vsel %vm69, %v252, %v251
    %v254 = vrot.slane %v233, 1
    %v255 = vsel %vm72, %v254, %v253
    %256 = vrot.lane.b32.xlu0 %v255, 112
    %v257 = vpop.permute.xlu0 %256
    %259 = vst.msk [vmem:[#allocation3] sm:$0xff] %vm75, %v257
    %v260 = vld [vmem:[#allocation4 + $0x1] sm:$0x1]
    %v261 = vld [vmem:[#allocation4 + $0x9] sm:$0x1]
    %v262 = vld [vmem:[#allocation4 + $0x11] sm:$0x1]
    %v263 = vld [vmem:[#allocation4 + $0x19] sm:$0x1]
    %v264 = vld [vmem:[#allocation4 + $0x21] sm:$0x1]
    %v265 = vld [vmem:[#allocation4 + $0x29] sm:$0x1]
    %v266 = vld [vmem:[#allocation4 + $0x31] sm:$0x1]
    %v267 = vld [vmem:[#allocation4 + $0x39] sm:$0x1]
    %v276 = vrot.slane %v261, 7
    %v277 = vsel %vm54, %v276, %v260
    %v278 = vrot.slane %v262, 6
    %v279 = vsel %vm57, %v278, %v277
    %v280 = vrot.slane %v263, 5
    %v281 = vsel %vm60, %v280, %v279
    %v282 = vrot.slane %v264, 4
    %v283 = vsel %vm63, %v282, %v281
    %v284 = vrot.slane %v265, 3
    %v285 = vsel %vm66, %v284, %v283
    %v286 = vrot.slane %v266, 2
    %v287 = vsel %vm69, %v286, %v285
    %v288 = vrot.slane %v267, 1
    %v289 = vsel %vm72, %v288, %v287
    %290 = vrot.lane.b32.xlu0 %v289, 16
    %v291 = vpop.permute.xlu0 %290
    %vm293 = vcmask 261248
    %294 = vst.msk [vmem:[#allocation2] sm:$0xff] %vm293, %v291
    %v295 = vld [vmem:[#allocation4 + $0x1] sm:$0x1]
    %v296 = vld [vmem:[#allocation4 + $0x9] sm:$0x1]
    %v297 = vld [vmem:[#allocation4 + $0x11] sm:$0x1]
    %v298 = vld [vmem:[#allocation4 + $0x19] sm:$0x1]
    %v299 = vld [vmem:[#allocation4 + $0x21] sm:$0x1]
    %v300 = vld [vmem:[#allocation4 + $0x29] sm:$0x1]
    %v301 = vld [vmem:[#allocation4 + $0x31] sm:$0x1]
    %v302 = vld [vmem:[#allocation4 + $0x39] sm:$0x1]
    %v311 = vrot.slane %v296, 7
    %v312 = vsel %vm54, %v311, %v295
    %v313 = vrot.slane %v297, 6
    %v314 = vsel %vm57, %v313, %v312
    %v315 = vrot.slane %v298, 5
    %v316 = vsel %vm60, %v315, %v314
    %v317 = vrot.slane %v299, 4
    %v318 = vsel %vm63, %v317, %v316
    %v319 = vrot.slane %v300, 3
    %v320 = vsel %vm66, %v319, %v318
    %v321 = vrot.slane %v301, 2
    %v322 = vsel %vm69, %v321, %v320
    %v323 = vrot.slane %v302, 1
    %v324 = vsel %vm72, %v323, %v322
    %325 = vrot.lane.b32.xlu0 %v324, 112
    %v326 = vpop.permute.xlu0 %325
    %v328 = vsel %vm75, %v326, 0.0
    %329 = vadd.xlane.f32.xlu0 %v328
    %v330 = vpop.xlane.xlu0 %329
    %v331 = vmul.f32 %v330, %v113
    %v333 = vrot.slane %v331, 1
    %v334 = vrot.slane %v331, 2
    %v335 = vrot.slane %v331, 3
    %v336 = vrot.slane %v331, 4
    %v337 = vrot.slane %v331, 5
    %v338 = vrot.slane %v331, 6
    %v339 = vrot.slane %v331, 7
    %v348 = vsub.f32 %v295, %v331
    %v349 = vsub.f32 %v296, %v333
    %v350 = vsub.f32 %v297, %v334
    %v351 = vsub.f32 %v298, %v335
    %v352 = vsub.f32 %v299, %v336
    %v353 = vsub.f32 %v300, %v337
    %v354 = vsub.f32 %v301, %v338
    %v355 = vsub.f32 %v302, %v339
    %v356 = vmul.f32 %v348, %v348
    %v357 = vmul.f32 %v349, %v349
    %v358 = vmul.f32 %v350, %v350
    %v359 = vmul.f32 %v351, %v351
    %v360 = vmul.f32 %v352, %v352
    %v361 = vmul.f32 %v353, %v353
    %v362 = vmul.f32 %v354, %v354
    %v363 = vmul.f32 %v355, %v355
    %v372 = vrot.slane %v357, 7
    %v373 = vsel %vm54, %v372, %v356
    %v374 = vrot.slane %v358, 6
    %v375 = vsel %vm57, %v374, %v373
    %v376 = vrot.slane %v359, 5
    %v377 = vsel %vm60, %v376, %v375
    %v378 = vrot.slane %v360, 4
    %v379 = vsel %vm63, %v378, %v377
    %v380 = vrot.slane %v361, 3
    %v381 = vsel %vm66, %v380, %v379
    %v382 = vrot.slane %v362, 2
    %v383 = vsel %vm69, %v382, %v381
    %v384 = vrot.slane %v363, 1
    %v385 = vsel %vm72, %v384, %v383
    %386 = vrot.lane.b32.xlu0 %v385, 112
    %v387 = vpop.permute.xlu0 %386
    %v389 = vsel %vm75, %v387, 0.0
    %390 = vadd.xlane.f32.xlu0 %v389
    %v391 = vpop.xlane.xlu0 %390
    %v392 = vmul.f32 %v391, %v113
    %v393 = vadd.f32 %v392, 1e-05
    %v394 = vrsqrt.pop %v393
    %v396 = vrot.slane %v394, 1
    %v397 = vrot.slane %v394, 2
    %v398 = vrot.slane %v394, 3
    %v399 = vrot.slane %v394, 4
    %v400 = vrot.slane %v394, 5
    %v401 = vrot.slane %v394, 6
    %v402 = vrot.slane %v394, 7
    %v411 = vmul.f32 %v348, %v394
    %v412 = vmul.f32 %v349, %v396
    %v413 = vmul.f32 %v350, %v397
    %v414 = vmul.f32 %v351, %v398
    %v415 = vmul.f32 %v352, %v399
    %v416 = vmul.f32 %v353, %v400
    %v417 = vmul.f32 %v354, %v401
    %v418 = vmul.f32 %v355, %v402
    %v419 = vmul.f32 %v411, %v208
    %v420 = vmul.f32 %v412, %v208
    %v421 = vmul.f32 %v413, %v208
    %v422 = vmul.f32 %v414, %v208
    %v423 = vmul.f32 %v415, %v208
    %v424 = vmul.f32 %v416, %v208
    %v425 = vmul.f32 %v417, %v208
    %v426 = vmul.f32 %v418, %v208
    %v427 = vadd.f32 %v419, %v224
    %v428 = vadd.f32 %v420, %v224
    %v429 = vadd.f32 %v421, %v224
    %v430 = vadd.f32 %v422, %v224
    %v431 = vadd.f32 %v423, %v224
    %v432 = vadd.f32 %v424, %v224
    %v433 = vadd.f32 %v425, %v224
    %v434 = vadd.f32 %v426, %v224
    %v443 = vrot.slane %v428, 7
    %v444 = vsel %vm54, %v443, %v427
    %v445 = vrot.slane %v429, 6
    %v446 = vsel %vm57, %v445, %v444
    %v447 = vrot.slane %v430, 5
    %v448 = vsel %vm60, %v447, %v446
    %v449 = vrot.slane %v431, 4
    %v450 = vsel %vm63, %v449, %v448
    %v451 = vrot.slane %v432, 3
    %v452 = vsel %vm66, %v451, %v450
    %v453 = vrot.slane %v433, 2
    %v454 = vsel %vm69, %v453, %v452
    %v455 = vrot.slane %v434, 1
    %v456 = vsel %vm72, %v455, %v454
    %458 = vst.msk [vmem:[#allocation3] sm:$0xff] %vm293, %v456
    %v459 = vld [vmem:[#allocation4 + $0x2] sm:$0x1]
    %v460 = vld [vmem:[#allocation4 + $0xa] sm:$0x1]
    %v461 = vld [vmem:[#allocation4 + $0x12] sm:$0x1]
    %v462 = vld [vmem:[#allocation4 + $0x1a] sm:$0x1]
    %v463 = vld [vmem:[#allocation4 + $0x22] sm:$0x1]
    %v464 = vld [vmem:[#allocation4 + $0x2a] sm:$0x1]
    %v465 = vld [vmem:[#allocation4 + $0x32] sm:$0x1]
    %v466 = vld [vmem:[#allocation4 + $0x3a] sm:$0x1]
    %v475 = vrot.slane %v460, 7
    %v476 = vsel %vm54, %v475, %v459
    %v477 = vrot.slane %v461, 6
    %v478 = vsel %vm57, %v477, %v476
    %v479 = vrot.slane %v462, 5
    %v480 = vsel %vm60, %v479, %v478
    %v481 = vrot.slane %v463, 4
    %v482 = vsel %vm63, %v481, %v480
    %v483 = vrot.slane %v464, 3
    %v484 = vsel %vm66, %v483, %v482
    %v485 = vrot.slane %v465, 2
    %v486 = vsel %vm69, %v485, %v484
    %v487 = vrot.slane %v466, 1
    %v488 = vsel %vm72, %v487, %v486
    %489 = vrot.lane.b32.xlu0 %v488, 32
    %v490 = vpop.permute.xlu0 %489
    %vm492 = vcmask 392448
    %493 = vst.msk [vmem:[#allocation2] sm:$0xff] %vm492, %v490
    %v494 = vld [vmem:[#allocation4 + $0x2] sm:$0x1]
    %v495 = vld [vmem:[#allocation4 + $0xa] sm:$0x1]
    %v496 = vld [vmem:[#allocation4 + $0x12] sm:$0x1]
    %v497 = vld [vmem:[#allocation4 + $0x1a] sm:$0x1]
    %v498 = vld [vmem:[#allocation4 + $0x22] sm:$0x1]
    %v499 = vld [vmem:[#allocation4 + $0x2a] sm:$0x1]
    %v500 = vld [vmem:[#allocation4 + $0x32] sm:$0x1]
    %v501 = vld [vmem:[#allocation4 + $0x3a] sm:$0x1]
    %v510 = vrot.slane %v495, 7
    %v511 = vsel %vm54, %v510, %v494
    %v512 = vrot.slane %v496, 6
    %v513 = vsel %vm57, %v512, %v511
    %v514 = vrot.slane %v497, 5
    %v515 = vsel %vm60, %v514, %v513
    %v516 = vrot.slane %v498, 4
    %v517 = vsel %vm63, %v516, %v515
    %v518 = vrot.slane %v499, 3
    %v519 = vsel %vm66, %v518, %v517
    %v520 = vrot.slane %v500, 2
    %v521 = vsel %vm69, %v520, %v519
    %v522 = vrot.slane %v501, 1
    %v523 = vsel %vm72, %v522, %v521
    %524 = vrot.lane.b32.xlu0 %v523, 112
    %v525 = vpop.permute.xlu0 %524
    %v527 = vsel %vm75, %v525, 0.0
    %528 = vadd.xlane.f32.xlu0 %v527
    %v529 = vpop.xlane.xlu0 %528
    %v530 = vmul.f32 %v529, %v113
    %v532 = vrot.slane %v530, 1
    %v533 = vrot.slane %v530, 2
    %v534 = vrot.slane %v530, 3
    %v535 = vrot.slane %v530, 4
    %v536 = vrot.slane %v530, 5
    %v537 = vrot.slane %v530, 6
    %v538 = vrot.slane %v530, 7
    %v547 = vsub.f32 %v494, %v530
    %v548 = vsub.f32 %v495, %v532
    %v549 = vsub.f32 %v496, %v533
    %v550 = vsub.f32 %v497, %v534
    %v551 = vsub.f32 %v498, %v535
    %v552 = vsub.f32 %v499, %v536
    %v553 = vsub.f32 %v500, %v537
    %v554 = vsub.f32 %v501, %v538
    %v555 = vmul.f32 %v547, %v547
    %v556 = vmul.f32 %v548, %v548
    %v557 = vmul.f32 %v549, %v549
    %v558 = vmul.f32 %v550, %v550
    %v559 = vmul.f32 %v551, %v551
    %v560 = vmul.f32 %v552, %v552
    %v561 = vmul.f32 %v553, %v553
    %v562 = vmul.f32 %v554, %v554
    %v571 = vrot.slane %v556, 7
    %v572 = vsel %vm54, %v571, %v555
    %v573 = vrot.slane %v557, 6
    %v574 = vsel %vm57, %v573, %v572
    %v575 = vrot.slane %v558, 5
    %v576 = vsel %vm60, %v575, %v574
    %v577 = vrot.slane %v559, 4
    %v578 = vsel %vm63, %v577, %v576
    %v579 = vrot.slane %v560, 3
    %v580 = vsel %vm66, %v579, %v578
    %v581 = vrot.slane %v561, 2
    %v582 = vsel %vm69, %v581, %v580
    %v583 = vrot.slane %v562, 1
    %v584 = vsel %vm72, %v583, %v582
    %585 = vrot.lane.b32.xlu0 %v584, 112
    %v586 = vpop.permute.xlu0 %585
    %v588 = vsel %vm75, %v586, 0.0
    %589 = vadd.xlane.f32.xlu0 %v588
    %v590 = vpop.xlane.xlu0 %589
    %v591 = vmul.f32 %v590, %v113
    %v592 = vadd.f32 %v591, 1e-05
    %v593 = vrsqrt.pop %v592
    %v595 = vrot.slane %v593, 1
    %v596 = vrot.slane %v593, 2
    %v597 = vrot.slane %v593, 3
    %v598 = vrot.slane %v593, 4
    %v599 = vrot.slane %v593, 5
    %v600 = vrot.slane %v593, 6
    %v601 = vrot.slane %v593, 7
    %v610 = vmul.f32 %v547, %v593
    %v611 = vmul.f32 %v548, %v595
    %v612 = vmul.f32 %v549, %v596
    %v613 = vmul.f32 %v550, %v597
    %v614 = vmul.f32 %v551, %v598
    %v615 = vmul.f32 %v552, %v599
    %v616 = vmul.f32 %v553, %v600
    %v617 = vmul.f32 %v554, %v601
    %v618 = vmul.f32 %v610, %v208
    %v619 = vmul.f32 %v611, %v208
    %v620 = vmul.f32 %v612, %v208
    %v621 = vmul.f32 %v613, %v208
    %v622 = vmul.f32 %v614, %v208
    %v623 = vmul.f32 %v615, %v208
    %v624 = vmul.f32 %v616, %v208
    %v625 = vmul.f32 %v617, %v208
    %v626 = vadd.f32 %v618, %v224
    %v627 = vadd.f32 %v619, %v224
    %v628 = vadd.f32 %v620, %v224
    %v629 = vadd.f32 %v621, %v224
    %v630 = vadd.f32 %v622, %v224
    %v631 = vadd.f32 %v623, %v224
    %v632 = vadd.f32 %v624, %v224
    %v633 = vadd.f32 %v625, %v224
    %v642 = vrot.slane %v627, 7
    %v643 = vsel %vm54, %v642, %v626
    %v644 = vrot.slane %v628, 6
    %v645 = vsel %vm57, %v644, %v643
    %v646 = vrot.slane %v629, 5
    %v647 = vsel %vm60, %v646, %v645
    %v648 = vrot.slane %v630, 4
    %v649 = vsel %vm63, %v648, %v647
    %v650 = vrot.slane %v631, 3
    %v651 = vsel %vm66, %v650, %v649
    %v652 = vrot.slane %v632, 2
    %v653 = vsel %vm69, %v652, %v651
    %v654 = vrot.slane %v633, 1
    %v655 = vsel %vm72, %v654, %v653
    %656 = vrot.lane.b32.xlu0 %v655, 16
    %v657 = vpop.permute.xlu0 %656
    %659 = vst.msk [vmem:[#allocation3] sm:$0xff] %vm492, %v657
    %v660 = vld [vmem:[#allocation4 + $0x3] sm:$0x1]
    %v661 = vld [vmem:[#allocation4 + $0xb] sm:$0x1]
    %v662 = vld [vmem:[#allocation4 + $0x13] sm:$0x1]
    %v663 = vld [vmem:[#allocation4 + $0x1b] sm:$0x1]
    %v664 = vld [vmem:[#allocation4 + $0x23] sm:$0x1]
    %v665 = vld [vmem:[#allocation4 + $0x2b] sm:$0x1]
    %v666 = vld [vmem:[#allocation4 + $0x33] sm:$0x1]
    %v667 = vld [vmem:[#allocation4 + $0x3b] sm:$0x1]
    %v676 = vrot.slane %v661, 7
    %v677 = vsel %vm54, %v676, %v660
    %v678 = vrot.slane %v662, 6
    %v679 = vsel %vm57, %v678, %v677
    %v680 = vrot.slane %v663, 5
    %v681 = vsel %vm60, %v680, %v679
    %v682 = vrot.slane %v664, 4
    %v683 = vsel %vm63, %v682, %v681
    %v684 = vrot.slane %v665, 3
    %v685 = vsel %vm66, %v684, %v683
    %v686 = vrot.slane %v666, 2
    %v687 = vsel %vm69, %v686, %v685
    %v688 = vrot.slane %v667, 1
    %v689 = vsel %vm72, %v688, %v687
    %690 = vrot.lane.b32.xlu0 %v689, 48
    %v691 = vpop.permute.xlu0 %690
    %vm693 = vcmask 523648
    %694 = vst.msk [vmem:[#allocation2] sm:$0xff] %vm693, %v691
    %v695 = vld [vmem:[#allocation4 + $0x3] sm:$0x1]
    %v696 = vld [vmem:[#allocation4 + $0xb] sm:$0x1]
    %v697 = vld [vmem:[#allocation4 + $0x13] sm:$0x1]
    %v698 = vld [vmem:[#allocation4 + $0x1b] sm:$0x1]
    %v699 = vld [vmem:[#allocation4 + $0x23] sm:$0x1]
    %v700 = vld [vmem:[#allocation4 + $0x2b] sm:$0x1]
    %v701 = vld [vmem:[#allocation4 + $0x33] sm:$0x1]
    %v702 = vld [vmem:[#allocation4 + $0x3b] sm:$0x1]
    %v711 = vrot.slane %v696, 7
    %v712 = vsel %vm54, %v711, %v695
    %v713 = vrot.slane %v697, 6
    %v714 = vsel %vm57, %v713, %v712
    %v715 = vrot.slane %v698, 5
    %v716 = vsel %vm60, %v715, %v714
    %v717 = vrot.slane %v699, 4
    %v718 = vsel %vm63, %v717, %v716
    %v719 = vrot.slane %v700, 3
    %v720 = vsel %vm66, %v719, %v718
    %v721 = vrot.slane %v701, 2
    %v722 = vsel %vm69, %v721, %v720
    %v723 = vrot.slane %v702, 1
    %v724 = vsel %vm72, %v723, %v722
    %725 = vrot.lane.b32.xlu0 %v724, 112
    %v726 = vpop.permute.xlu0 %725
    %v728 = vsel %vm75, %v726, 0.0
    %729 = vadd.xlane.f32.xlu0 %v728
    %v730 = vpop.xlane.xlu0 %729
    %v731 = vmul.f32 %v730, %v113
    %v733 = vrot.slane %v731, 1
    %v734 = vrot.slane %v731, 2
    %v735 = vrot.slane %v731, 3
    %v736 = vrot.slane %v731, 4
    %v737 = vrot.slane %v731, 5
    %v738 = vrot.slane %v731, 6
    %v739 = vrot.slane %v731, 7
    %v748 = vsub.f32 %v695, %v731
    %v749 = vsub.f32 %v696, %v733
    %v750 = vsub.f32 %v697, %v734
    %v751 = vsub.f32 %v698, %v735
    %v752 = vsub.f32 %v699, %v736
    %v753 = vsub.f32 %v700, %v737
    %v754 = vsub.f32 %v701, %v738
    %v755 = vsub.f32 %v702, %v739
    %v756 = vmul.f32 %v748, %v748
    %v757 = vmul.f32 %v749, %v749
    %v758 = vmul.f32 %v750, %v750
    %v759 = vmul.f32 %v751, %v751
    %v760 = vmul.f32 %v752, %v752
    %v761 = vmul.f32 %v753, %v753
    %v762 = vmul.f32 %v754, %v754
    %v763 = vmul.f32 %v755, %v755
    %v772 = vrot.slane %v757, 7
    %v773 = vsel %vm54, %v772, %v756
    %v774 = vrot.slane %v758, 6
    %v775 = vsel %vm57, %v774, %v773
    %v776 = vrot.slane %v759, 5
    %v777 = vsel %vm60, %v776, %v775
    %v778 = vrot.slane %v760, 4
    %v779 = vsel %vm63, %v778, %v777
    %v780 = vrot.slane %v761, 3
    %v781 = vsel %vm66, %v780, %v779
    %v782 = vrot.slane %v762, 2
    %v783 = vsel %vm69, %v782, %v781
    %v784 = vrot.slane %v763, 1
    %v785 = vsel %vm72, %v784, %v783
    %786 = vrot.lane.b32.xlu0 %v785, 112
    %v787 = vpop.permute.xlu0 %786
    %v789 = vsel %vm75, %v787, 0.0
    %790 = vadd.xlane.f32.xlu0 %v789
    %v791 = vpop.xlane.xlu0 %790
    %v792 = vmul.f32 %v791, %v113
    %v793 = vadd.f32 %v792, 1e-05
    %v794 = vrsqrt.pop %v793
    %v796 = vrot.slane %v794, 1
    %v797 = vrot.slane %v794, 2
    %v798 = vrot.slane %v794, 3
    %v799 = vrot.slane %v794, 4
    %v800 = vrot.slane %v794, 5
    %v801 = vrot.slane %v794, 6
    %v802 = vrot.slane %v794, 7
    %v811 = vmul.f32 %v748, %v794
    %v812 = vmul.f32 %v749, %v796
    %v813 = vmul.f32 %v750, %v797
    %v814 = vmul.f32 %v751, %v798
    %v815 = vmul.f32 %v752, %v799
    %v816 = vmul.f32 %v753, %v800
    %v817 = vmul.f32 %v754, %v801
    %v818 = vmul.f32 %v755, %v802
    %v819 = vmul.f32 %v811, %v208
    %v820 = vmul.f32 %v812, %v208
    %v821 = vmul.f32 %v813, %v208
    %v822 = vmul.f32 %v814, %v208
    %v823 = vmul.f32 %v815, %v208
    %v824 = vmul.f32 %v816, %v208
    %v825 = vmul.f32 %v817, %v208
    %v826 = vmul.f32 %v818, %v208
    %v827 = vadd.f32 %v819, %v224
    %v828 = vadd.f32 %v820, %v224
    %v829 = vadd.f32 %v821, %v224
    %v830 = vadd.f32 %v822, %v224
    %v831 = vadd.f32 %v823, %v224
    %v832 = vadd.f32 %v824, %v224
    %v833 = vadd.f32 %v825, %v224
    %v834 = vadd.f32 %v826, %v224
    %v843 = vrot.slane %v828, 7
    %v844 = vsel %vm54, %v843, %v827
    %v845 = vrot.slane %v829, 6
    %v846 = vsel %vm57, %v845, %v844
    %v847 = vrot.slane %v830, 5
    %v848 = vsel %vm60, %v847, %v846
    %v849 = vrot.slane %v831, 4
    %v850 = vsel %vm63, %v849, %v848
    %v851 = vrot.slane %v832, 3
    %v852 = vsel %vm66, %v851, %v850
    %v853 = vrot.slane %v833, 2
    %v854 = vsel %vm69, %v853, %v852
    %v855 = vrot.slane %v834, 1
    %v856 = vsel %vm72, %v855, %v854
    %857 = vrot.lane.b32.xlu0 %v856, 32
    %v858 = vpop.permute.xlu0 %857
    %860 = vst.msk [vmem:[#allocation3] sm:$0xff] %vm693, %v858
    %v861 = vld [vmem:[#allocation4 + $0x4] sm:$0x1]
    %v862 = vld [vmem:[#allocation4 + $0xc] sm:$0x1]
    %v863 = vld [vmem:[#allocation4 + $0x14] sm:$0x1]
    %v864 = vld [vmem:[#allocation4 + $0x1c] sm:$0x1]
    %v865 = vld [vmem:[#allocation4 + $0x24] sm:$0x1]
    %v866 = vld [vmem:[#allocation4 + $0x2c] sm:$0x1]
    %v867 = vld [vmem:[#allocation4 + $0x34] sm:$0x1]
    %v868 = vld [vmem:[#allocation4 + $0x3c] sm:$0x1]
    %v877 = vrot.slane %v862, 7
    %v878 = vsel %vm54, %v877, %v861
    %v879 = vrot.slane %v863, 6
    %v880 = vsel %vm57, %v879, %v878
    %v881 = vrot.slane %v864, 5
    %v882 = vsel %vm60, %v881, %v880
    %v883 = vrot.slane %v865, 4
    %v884 = vsel %vm63, %v883, %v882
    %v885 = vrot.slane %v866, 3
    %v886 = vsel %vm66, %v885, %v884
    %v887 = vrot.slane %v867, 2
    %v888 = vsel %vm69, %v887, %v886
    %v889 = vrot.slane %v868, 1
    %v890 = vsel %vm72, %v889, %v888
    %891 = vrot.lane.b32.xlu0 %v890, 64
    %v892 = vpop.permute.xlu0 %891
    %vm894 = vcmask 654848
    %895 = vst.msk [vmem:[#allocation2] sm:$0xff] %vm894, %v892
    %v896 = vld [vmem:[#allocation4 + $0x4] sm:$0x1]
    %v897 = vld [vmem:[#allocation4 + $0xc] sm:$0x1]
    %v898 = vld [vmem:[#allocation4 + $0x14] sm:$0x1]
    %v899 = vld [vmem:[#allocation4 + $0x1c] sm:$0x1]
    %v900 = vld [vmem:[#allocation4 + $0x24] sm:$0x1]
    %v901 = vld [vmem:[#allocation4 + $0x2c] sm:$0x1]
    %v902 = vld [vmem:[#allocation4 + $0x34] sm:$0x1]
    %v903 = vld [vmem:[#allocation4 + $0x3c] sm:$0x1]
    %v912 = vrot.slane %v897, 7
    %v913 = vsel %vm54, %v912, %v896
    %v914 = vrot.slane %v898, 6
    %v915 = vsel %vm57, %v914, %v913
    %v916 = vrot.slane %v899, 5
    %v917 = vsel %vm60, %v916, %v915
    %v918 = vrot.slane %v900, 4
    %v919 = vsel %vm63, %v918, %v917
    %v920 = vrot.slane %v901, 3
    %v921 = vsel %vm66, %v920, %v919
    %v922 = vrot.slane %v902, 2
    %v923 = vsel %vm69, %v922, %v921
    %v924 = vrot.slane %v903, 1
    %v925 = vsel %vm72, %v924, %v923
    %926 = vrot.lane.b32.xlu0 %v925, 112
    %v927 = vpop.permute.xlu0 %926
    %v929 = vsel %vm75, %v927, 0.0
    %930 = vadd.xlane.f32.xlu0 %v929
    %v931 = vpop.xlane.xlu0 %930
    %v932 = vmul.f32 %v931, %v113
    %v934 = vrot.slane %v932, 1
    %v935 = vrot.slane %v932, 2
    %v936 = vrot.slane %v932, 3
    %v937 = vrot.slane %v932, 4
    %v938 = vrot.slane %v932, 5
    %v939 = vrot.slane %v932, 6
    %v940 = vrot.slane %v932, 7
    %v949 = vsub.f32 %v896, %v932
    %v950 = vsub.f32 %v897, %v934
    %v951 = vsub.f32 %v898, %v935
    %v952 = vsub.f32 %v899, %v936
    %v953 = vsub.f32 %v900, %v937
    %v954 = vsub.f32 %v901, %v938
    %v955 = vsub.f32 %v902, %v939
    %v956 = vsub.f32 %v903, %v940
    %v957 = vmul.f32 %v949, %v949
    %v958 = vmul.f32 %v950, %v950
    %v959 = vmul.f32 %v951, %v951
    %v960 = vmul.f32 %v952, %v952
    %v961 = vmul.f32 %v953, %v953
    %v962 = vmul.f32 %v954, %v954
    %v963 = vmul.f32 %v955, %v955
    %v964 = vmul.f32 %v956, %v956
    %v973 = vrot.slane %v958, 7
    %v974 = vsel %vm54, %v973, %v957
    %v975 = vrot.slane %v959, 6
    %v976 = vsel %vm57, %v975, %v974
    %v977 = vrot.slane %v960, 5
    %v978 = vsel %vm60, %v977, %v976
    %v979 = vrot.slane %v961, 4
    %v980 = vsel %vm63, %v979, %v978
    %v981 = vrot.slane %v962, 3
    %v982 = vsel %vm66, %v981, %v980
    %v983 = vrot.slane %v963, 2
    %v984 = vsel %vm69, %v983, %v982
    %v985 = vrot.slane %v964, 1
    %v986 = vsel %vm72, %v985, %v984
    %987 = vrot.lane.b32.xlu0 %v986, 112
    %v988 = vpop.permute.xlu0 %987
    %v990 = vsel %vm75, %v988, 0.0
    %991 = vadd.xlane.f32.xlu0 %v990
    %v992 = vpop.xlane.xlu0 %991
    %v993 = vmul.f32 %v992, %v113
    %v994 = vadd.f32 %v993, 1e-05
    %v995 = vrsqrt.pop %v994
    %v997 = vrot.slane %v995, 1
    %v998 = vrot.slane %v995, 2
    %v999 = vrot.slane %v995, 3
    %v1000 = vrot.slane %v995, 4
    %v1001 = vrot.slane %v995, 5
    %v1002 = vrot.slane %v995, 6
    %v1003 = vrot.slane %v995, 7
    %v1012 = vmul.f32 %v949, %v995
    %v1013 = vmul.f32 %v950, %v997
    %v1014 = vmul.f32 %v951, %v998
    %v1015 = vmul.f32 %v952, %v999
    %v1016 = vmul.f32 %v953, %v1000
    %v1017 = vmul.f32 %v954, %v1001
    %v1018 = vmul.f32 %v955, %v1002
    %v1019 = vmul.f32 %v956, %v1003
    %v1020 = vmul.f32 %v1012, %v208
    %v1021 = vmul.f32 %v1013, %v208
    %v1022 = vmul.f32 %v1014, %v208
    %v1023 = vmul.f32 %v1015, %v208
    %v1024 = vmul.f32 %v1016, %v208
    %v1025 = vmul.f32 %v1017, %v208
    %v1026 = vmul.f32 %v1018, %v208
    %v1027 = vmul.f32 %v1019, %v208
    %v1028 = vadd.f32 %v1020, %v224
    %v1029 = vadd.f32 %v1021, %v224
    %v1030 = vadd.f32 %v1022, %v224
    %v1031 = vadd.f32 %v1023, %v224
    %v1032 = vadd.f32 %v1024, %v224
    %v1033 = vadd.f32 %v1025, %v224
    %v1034 = vadd.f32 %v1026, %v224
    %v1035 = vadd.f32 %v1027, %v224
    %v1044 = vrot.slane %v1029, 7
    %v1045 = vsel %vm54, %v1044, %v1028
    %v1046 = vrot.slane %v1030, 6
    %v1047 = vsel %vm57, %v1046, %v1045
    %v1048 = vrot.slane %v1031, 5
    %v1049 = vsel %vm60, %v1048, %v1047
    %v1050 = vrot.slane %v1032, 4
    %v1051 = vsel %vm63, %v1050, %v1049
    %v1052 = vrot.slane %v1033, 3
    %v1053 = vsel %vm66, %v1052, %v1051
    %v1054 = vrot.slane %v1034, 2
    %v1055 = vsel %vm69, %v1054, %v1053
    %v1056 = vrot.slane %v1035, 1
    %v1057 = vsel %vm72, %v1056, %v1055
    %1058 = vrot.lane.b32.xlu0 %v1057, 48
    %v1059 = vpop.permute.xlu0 %1058
    %1061 = vst.msk [vmem:[#allocation3] sm:$0xff] %vm894, %v1059
    %v1062 = vld [vmem:[#allocation4 + $0x5] sm:$0x1]
    %v1063 = vld [vmem:[#allocation4 + $0xd] sm:$0x1]
    %v1064 = vld [vmem:[#allocation4 + $0x15] sm:$0x1]
    %v1065 = vld [vmem:[#allocation4 + $0x1d] sm:$0x1]
    %v1066 = vld [vmem:[#allocation4 + $0x25] sm:$0x1]
    %v1067 = vld [vmem:[#allocation4 + $0x2d] sm:$0x1]
    %v1068 = vld [vmem:[#allocation4 + $0x35] sm:$0x1]
    %v1069 = vld [vmem:[#allocation4 + $0x3d] sm:$0x1]
    %v1078 = vrot.slane %v1063, 7
    %v1079 = vsel %vm54, %v1078, %v1062
    %v1080 = vrot.slane %v1064, 6
    %v1081 = vsel %vm57, %v1080, %v1079
    %v1082 = vrot.slane %v1065, 5
    %v1083 = vsel %vm60, %v1082, %v1081
    %v1084 = vrot.slane %v1066, 4
    %v1085 = vsel %vm63, %v1084, %v1083
    %v1086 = vrot.slane %v1067, 3
    %v1087 = vsel %vm66, %v1086, %v1085
    %v1088 = vrot.slane %v1068, 2
    %v1089 = vsel %vm69, %v1088, %v1087
    %v1090 = vrot.slane %v1069, 1
    %v1091 = vsel %vm72, %v1090, %v1089
    %1092 = vrot.lane.b32.xlu0 %v1091, 80
    %v1093 = vpop.permute.xlu0 %1092
    %vm1095 = vcmask 786048
    %1096 = vst.msk [vmem:[#allocation2] sm:$0xff] %vm1095, %v1093
    %v1097 = vld [vmem:[#allocation4 + $0x5] sm:$0x1]
    %v1098 = vld [vmem:[#allocation4 + $0xd] sm:$0x1]
    %v1099 = vld [vmem:[#allocation4 + $0x15] sm:$0x1]
    %v1100 = vld [vmem:[#allocation4 + $0x1d] sm:$0x1]
    %v1101 = vld [vmem:[#allocation4 + $0x25] sm:$0x1]
    %v1102 = vld [vmem:[#allocation4 + $0x2d] sm:$0x1]
    %v1103 = vld [vmem:[#allocation4 + $0x35] sm:$0x1]
    %v1104 = vld [vmem:[#allocation4 + $0x3d] sm:$0x1]
    %v1113 = vrot.slane %v1098, 7
    %v1114 = vsel %vm54, %v1113, %v1097
    %v1115 = vrot.slane %v1099, 6
    %v1116 = vsel %vm57, %v1115, %v1114
    %v1117 = vrot.slane %v1100, 5
    %v1118 = vsel %vm60, %v1117, %v1116
    %v1119 = vrot.slane %v1101, 4
    %v1120 = vsel %vm63, %v1119, %v1118
    %v1121 = vrot.slane %v1102, 3
    %v1122 = vsel %vm66, %v1121, %v1120
    %v1123 = vrot.slane %v1103, 2
    %v1124 = vsel %vm69, %v1123, %v1122
    %v1125 = vrot.slane %v1104, 1
    %v1126 = vsel %vm72, %v1125, %v1124
    %1127 = vrot.lane.b32.xlu0 %v1126, 112
    %v1128 = vpop.permute.xlu0 %1127
    %v1130 = vsel %vm75, %v1128, 0.0
    %1131 = vadd.xlane.f32.xlu0 %v1130
    %v1132 = vpop.xlane.xlu0 %1131
    %v1133 = vmul.f32 %v1132, %v113
    %v1135 = vrot.slane %v1133, 1
    %v1136 = vrot.slane %v1133, 2
    %v1137 = vrot.slane %v1133, 3
    %v1138 = vrot.slane %v1133, 4
    %v1139 = vrot.slane %v1133, 5
    %v1140 = vrot.slane %v1133, 6
    %v1141 = vrot.slane %v1133, 7
    %v1150 = vsub.f32 %v1097, %v1133
    %v1151 = vsub.f32 %v1098, %v1135
    %v1152 = vsub.f32 %v1099, %v1136
    %v1153 = vsub.f32 %v1100, %v1137
    %v1154 = vsub.f32 %v1101, %v1138
    %v1155 = vsub.f32 %v1102, %v1139
    %v1156 = vsub.f32 %v1103, %v1140
    %v1157 = vsub.f32 %v1104, %v1141
    %v1158 = vmul.f32 %v1150, %v1150
    %v1159 = vmul.f32 %v1151, %v1151
    %v1160 = vmul.f32 %v1152, %v1152
    %v1161 = vmul.f32 %v1153, %v1153
    %v1162 = vmul.f32 %v1154, %v1154
    %v1163 = vmul.f32 %v1155, %v1155
    %v1164 = vmul.f32 %v1156, %v1156
    %v1165 = vmul.f32 %v1157, %v1157
    %v1174 = vrot.slane %v1159, 7
    %v1175 = vsel %vm54, %v1174, %v1158
    %v1176 = vrot.slane %v1160, 6
    %v1177 = vsel %vm57, %v1176, %v1175
    %v1178 = vrot.slane %v1161, 5
    %v1179 = vsel %vm60, %v1178, %v1177
    %v1180 = vrot.slane %v1162, 4
    %v1181 = vsel %vm63, %v1180, %v1179
    %v1182 = vrot.slane %v1163, 3
    %v1183 = vsel %vm66, %v1182, %v1181
    %v1184 = vrot.slane %v1164, 2
    %v1185 = vsel %vm69, %v1184, %v1183
    %v1186 = vrot.slane %v1165, 1
    %v1187 = vsel %vm72, %v1186, %v1185
    %1188 = vrot.lane.b32.xlu0 %v1187, 112
    %v1189 = vpop.permute.xlu0 %1188
    %v1191 = vsel %vm75, %v1189, 0.0
    %1192 = vadd.xlane.f32.xlu0 %v1191
    %v1193 = vpop.xlane.xlu0 %1192
    %v1194 = vmul.f32 %v1193, %v113
    %v1195 = vadd.f32 %v1194, 1e-05
    %v1196 = vrsqrt.pop %v1195
    %v1198 = vrot.slane %v1196, 1
    %v1199 = vrot.slane %v1196, 2
    %v1200 = vrot.slane %v1196, 3
    %v1201 = vrot.slane %v1196, 4
    %v1202 = vrot.slane %v1196, 5
    %v1203 = vrot.slane %v1196, 6
    %v1204 = vrot.slane %v1196, 7
    %v1213 = vmul.f32 %v1150, %v1196
    %v1214 = vmul.f32 %v1151, %v1198
    %v1215 = vmul.f32 %v1152, %v1199
    %v1216 = vmul.f32 %v1153, %v1200
    %v1217 = vmul.f32 %v1154, %v1201
    %v1218 = vmul.f32 %v1155, %v1202
    %v1219 = vmul.f32 %v1156, %v1203
    %v1220 = vmul.f32 %v1157, %v1204
    %v1221 = vmul.f32 %v1213, %v208
    %v1222 = vmul.f32 %v1214, %v208
    %v1223 = vmul.f32 %v1215, %v208
    %v1224 = vmul.f32 %v1216, %v208
    %v1225 = vmul.f32 %v1217, %v208
    %v1226 = vmul.f32 %v1218, %v208
    %v1227 = vmul.f32 %v1219, %v208
    %v1228 = vmul.f32 %v1220, %v208
    %v1229 = vadd.f32 %v1221, %v224
    %v1230 = vadd.f32 %v1222, %v224
    %v1231 = vadd.f32 %v1223, %v224
    %v1232 = vadd.f32 %v1224, %v224
    %v1233 = vadd.f32 %v1225, %v224
    %v1234 = vadd.f32 %v1226, %v224
    %v1235 = vadd.f32 %v1227, %v224
    %v1236 = vadd.f32 %v1228, %v224
    %v1245 = vrot.slane %v1230, 7
    %v1246 = vsel %vm54, %v1245, %v1229
    %v1247 = vrot.slane %v1231, 6
    %v1248 = vsel %vm57, %v1247, %v1246
    %v1249 = vrot.slane %v1232, 5
    %v1250 = vsel %vm60, %v1249, %v1248
    %v1251 = vrot.slane %v1233, 4
    %v1252 = vsel %vm63, %v1251, %v1250
    %v1253 = vrot.slane %v1234, 3
    %v1254 = vsel %vm66, %v1253, %v1252
    %v1255 = vrot.slane %v1235, 2
    %v1256 = vsel %vm69, %v1255, %v1254
    %v1257 = vrot.slane %v1236, 1
    %v1258 = vsel %vm72, %v1257, %v1256
    %1259 = vrot.lane.b32.xlu0 %v1258, 64
    %v1260 = vpop.permute.xlu0 %1259
    %1262 = vst.msk [vmem:[#allocation3] sm:$0xff] %vm1095, %v1260
    %v1263 = vld [vmem:[#allocation4 + $0x6] sm:$0x1]
    %v1264 = vld [vmem:[#allocation4 + $0xe] sm:$0x1]
    %v1265 = vld [vmem:[#allocation4 + $0x16] sm:$0x1]
    %v1266 = vld [vmem:[#allocation4 + $0x1e] sm:$0x1]
    %v1267 = vld [vmem:[#allocation4 + $0x26] sm:$0x1]
    %v1268 = vld [vmem:[#allocation4 + $0x2e] sm:$0x1]
    %v1269 = vld [vmem:[#allocation4 + $0x36] sm:$0x1]
    %v1270 = vld [vmem:[#allocation4 + $0x3e] sm:$0x1]
    %v1279 = vrot.slane %v1264, 7
    %v1280 = vsel %vm54, %v1279, %v1263
    %v1281 = vrot.slane %v1265, 6
    %v1282 = vsel %vm57, %v1281, %v1280
    %v1283 = vrot.slane %v1266, 5
    %v1284 = vsel %vm60, %v1283, %v1282
    %v1285 = vrot.slane %v1267, 4
    %v1286 = vsel %vm63, %v1285, %v1284
    %v1287 = vrot.slane %v1268, 3
    %v1288 = vsel %vm66, %v1287, %v1286
    %v1289 = vrot.slane %v1269, 2
    %v1290 = vsel %vm69, %v1289, %v1288
    %v1291 = vrot.slane %v1270, 1
    %v1292 = vsel %vm72, %v1291, %v1290
    %1293 = vrot.lane.b32.xlu0 %v1292, 96
    %v1294 = vpop.permute.xlu0 %1293
    %vm1296 = vcmask 917248
    %1297 = vst.msk [vmem:[#allocation2] sm:$0xff] %vm1296, %v1294
    %v1298 = vld [vmem:[#allocation4 + $0x6] sm:$0x1]
    %v1299 = vld [vmem:[#allocation4 + $0xe] sm:$0x1]
    %v1300 = vld [vmem:[#allocation4 + $0x16] sm:$0x1]
    %v1301 = vld [vmem:[#allocation4 + $0x1e] sm:$0x1]
    %v1302 = vld [vmem:[#allocation4 + $0x26] sm:$0x1]
    %v1303 = vld [vmem:[#allocation4 + $0x2e] sm:$0x1]
    %v1304 = vld [vmem:[#allocation4 + $0x36] sm:$0x1]
    %v1305 = vld [vmem:[#allocation4 + $0x3e] sm:$0x1]
    %v1314 = vrot.slane %v1299, 7
    %v1315 = vsel %vm54, %v1314, %v1298
    %v1316 = vrot.slane %v1300, 6
    %v1317 = vsel %vm57, %v1316, %v1315
    %v1318 = vrot.slane %v1301, 5
    %v1319 = vsel %vm60, %v1318, %v1317
    %v1320 = vrot.slane %v1302, 4
    %v1321 = vsel %vm63, %v1320, %v1319
    %v1322 = vrot.slane %v1303, 3
    %v1323 = vsel %vm66, %v1322, %v1321
    %v1324 = vrot.slane %v1304, 2
    %v1325 = vsel %vm69, %v1324, %v1323
    %v1326 = vrot.slane %v1305, 1
    %v1327 = vsel %vm72, %v1326, %v1325
    %1328 = vrot.lane.b32.xlu0 %v1327, 112
    %v1329 = vpop.permute.xlu0 %1328
    %v1331 = vsel %vm75, %v1329, 0.0
    %1332 = vadd.xlane.f32.xlu0 %v1331
    %v1333 = vpop.xlane.xlu0 %1332
    %v1334 = vmul.f32 %v1333, %v113
    %v1336 = vrot.slane %v1334, 1
    %v1337 = vrot.slane %v1334, 2
    %v1338 = vrot.slane %v1334, 3
    %v1339 = vrot.slane %v1334, 4
    %v1340 = vrot.slane %v1334, 5
    %v1341 = vrot.slane %v1334, 6
    %v1342 = vrot.slane %v1334, 7
    %v1351 = vsub.f32 %v1298, %v1334
    %v1352 = vsub.f32 %v1299, %v1336
    %v1353 = vsub.f32 %v1300, %v1337
    %v1354 = vsub.f32 %v1301, %v1338
    %v1355 = vsub.f32 %v1302, %v1339
    %v1356 = vsub.f32 %v1303, %v1340
    %v1357 = vsub.f32 %v1304, %v1341
    %v1358 = vsub.f32 %v1305, %v1342
    %v1359 = vmul.f32 %v1351, %v1351
    %v1360 = vmul.f32 %v1352, %v1352
    %v1361 = vmul.f32 %v1353, %v1353
    %v1362 = vmul.f32 %v1354, %v1354
    %v1363 = vmul.f32 %v1355, %v1355
    %v1364 = vmul.f32 %v1356, %v1356
    %v1365 = vmul.f32 %v1357, %v1357
    %v1366 = vmul.f32 %v1358, %v1358
    %v1375 = vrot.slane %v1360, 7
    %v1376 = vsel %vm54, %v1375, %v1359
    %v1377 = vrot.slane %v1361, 6
    %v1378 = vsel %vm57, %v1377, %v1376
    %v1379 = vrot.slane %v1362, 5
    %v1380 = vsel %vm60, %v1379, %v1378
    %v1381 = vrot.slane %v1363, 4
    %v1382 = vsel %vm63, %v1381, %v1380
    %v1383 = vrot.slane %v1364, 3
    %v1384 = vsel %vm66, %v1383, %v1382
    %v1385 = vrot.slane %v1365, 2
    %v1386 = vsel %vm69, %v1385, %v1384
    %v1387 = vrot.slane %v1366, 1
    %v1388 = vsel %vm72, %v1387, %v1386
    %1389 = vrot.lane.b32.xlu0 %v1388, 112
    %v1390 = vpop.permute.xlu0 %1389
    %v1392 = vsel %vm75, %v1390, 0.0
    %1393 = vadd.xlane.f32.xlu0 %v1392
    %v1394 = vpop.xlane.xlu0 %1393
    %v1395 = vmul.f32 %v1394, %v113
    %v1396 = vadd.f32 %v1395, 1e-05
    %v1397 = vrsqrt.pop %v1396
    %v1399 = vrot.slane %v1397, 1
    %v1400 = vrot.slane %v1397, 2
    %v1401 = vrot.slane %v1397, 3
    %v1402 = vrot.slane %v1397, 4
    %v1403 = vrot.slane %v1397, 5
    %v1404 = vrot.slane %v1397, 6
    %v1405 = vrot.slane %v1397, 7
    %v1414 = vmul.f32 %v1351, %v1397
    %v1415 = vmul.f32 %v1352, %v1399
    %v1416 = vmul.f32 %v1353, %v1400
    %v1417 = vmul.f32 %v1354, %v1401
    %v1418 = vmul.f32 %v1355, %v1402
    %v1419 = vmul.f32 %v1356, %v1403
    %v1420 = vmul.f32 %v1357, %v1404
    %v1421 = vmul.f32 %v1358, %v1405
    %v1422 = vmul.f32 %v1414, %v208
    %v1423 = vmul.f32 %v1415, %v208
    %v1424 = vmul.f32 %v1416, %v208
    %v1425 = vmul.f32 %v1417, %v208
    %v1426 = vmul.f32 %v1418, %v208
    %v1427 = vmul.f32 %v1419, %v208
    %v1428 = vmul.f32 %v1420, %v208
    %v1429 = vmul.f32 %v1421, %v208
    %v1430 = vadd.f32 %v1422, %v224
    %v1431 = vadd.f32 %v1423, %v224
    %v1432 = vadd.f32 %v1424, %v224
    %v1433 = vadd.f32 %v1425, %v224
    %v1434 = vadd.f32 %v1426, %v224
    %v1435 = vadd.f32 %v1427, %v224
    %v1436 = vadd.f32 %v1428, %v224
    %v1437 = vadd.f32 %v1429, %v224
    %v1446 = vrot.slane %v1431, 7
    %v1447 = vsel %vm54, %v1446, %v1430
    %v1448 = vrot.slane %v1432, 6
    %v1449 = vsel %vm57, %v1448, %v1447
    %v1450 = vrot.slane %v1433, 5
    %v1451 = vsel %vm60, %v1450, %v1449
    %v1452 = vrot.slane %v1434, 4
    %v1453 = vsel %vm63, %v1452, %v1451
    %v1454 = vrot.slane %v1435, 3
    %v1455 = vsel %vm66, %v1454, %v1453
    %v1456 = vrot.slane %v1436, 2
    %v1457 = vsel %vm69, %v1456, %v1455
    %v1458 = vrot.slane %v1437, 1
    %v1459 = vsel %vm72, %v1458, %v1457
    %1460 = vrot.lane.b32.xlu0 %v1459, 80
    %v1461 = vpop.permute.xlu0 %1460
    %1463 = vst.msk [vmem:[#allocation3] sm:$0xff] %vm1296, %v1461
    %v1464 = vld [vmem:[#allocation4 + $0x7] sm:$0x1]
    %v1465 = vld [vmem:[#allocation4 + $0xf] sm:$0x1]
    %v1466 = vld [vmem:[#allocation4 + $0x17] sm:$0x1]
    %v1467 = vld [vmem:[#allocation4 + $0x1f] sm:$0x1]
    %v1468 = vld [vmem:[#allocation4 + $0x27] sm:$0x1]
    %v1469 = vld [vmem:[#allocation4 + $0x2f] sm:$0x1]
    %v1470 = vld [vmem:[#allocation4 + $0x37] sm:$0x1]
    %v1471 = vld [vmem:[#allocation4 + $0x3f] sm:$0x1]
    %v1480 = vrot.slane %v1465, 7
    %v1481 = vsel %vm54, %v1480, %v1464
    %v1482 = vrot.slane %v1466, 6
    %v1483 = vsel %vm57, %v1482, %v1481
    %v1484 = vrot.slane %v1467, 5
    %v1485 = vsel %vm60, %v1484, %v1483
    %v1486 = vrot.slane %v1468, 4
    %v1487 = vsel %vm63, %v1486, %v1485
    %v1488 = vrot.slane %v1469, 3
    %v1489 = vsel %vm66, %v1488, %v1487
    %v1490 = vrot.slane %v1470, 2
    %v1491 = vsel %vm69, %v1490, %v1489
    %v1492 = vrot.slane %v1471, 1
    %v1493 = vsel %vm72, %v1492, %v1491
    %1494 = vrot.lane.b32.xlu0 %v1493, 112
    %v1495 = vpop.permute.xlu0 %1494
    %vm1497 = vcmask 1048448
    %1498 = vst.msk [vmem:[#allocation2] sm:$0xff] %vm1497, %v1495
    %v1499 = vld [vmem:[#allocation4 + $0x7] sm:$0x1]
    %v1500 = vld [vmem:[#allocation4 + $0xf] sm:$0x1]
    %v1501 = vld [vmem:[#allocation4 + $0x17] sm:$0x1]
    %v1502 = vld [vmem:[#allocation4 + $0x1f] sm:$0x1]
    %v1503 = vld [vmem:[#allocation4 + $0x27] sm:$0x1]
    %v1504 = vld [vmem:[#allocation4 + $0x2f] sm:$0x1]
    %v1505 = vld [vmem:[#allocation4 + $0x37] sm:$0x1]
    %v1506 = vld [vmem:[#allocation4 + $0x3f] sm:$0x1]
    %v1515 = vrot.slane %v1500, 7
    %v1516 = vsel %vm54, %v1515, %v1499
    %v1517 = vrot.slane %v1501, 6
    %v1518 = vsel %vm57, %v1517, %v1516
    %v1519 = vrot.slane %v1502, 5
    %v1520 = vsel %vm60, %v1519, %v1518
    %v1521 = vrot.slane %v1503, 4
    %v1522 = vsel %vm63, %v1521, %v1520
    %v1523 = vrot.slane %v1504, 3
    %v1524 = vsel %vm66, %v1523, %v1522
    %v1525 = vrot.slane %v1505, 2
    %v1526 = vsel %vm69, %v1525, %v1524
    %v1527 = vrot.slane %v1506, 1
    %v1528 = vsel %vm72, %v1527, %v1526
    %1529 = vrot.lane.b32.xlu0 %v1528, 112
    %v1530 = vpop.permute.xlu0 %1529
    %v1532 = vsel %vm75, %v1530, 0.0
    %1533 = vadd.xlane.f32.xlu0 %v1532
    %v1534 = vpop.xlane.xlu0 %1533
    %v1535 = vmul.f32 %v1534, %v113
    %v1537 = vrot.slane %v1535, 1
    %v1538 = vrot.slane %v1535, 2
    %v1539 = vrot.slane %v1535, 3
    %v1540 = vrot.slane %v1535, 4
    %v1541 = vrot.slane %v1535, 5
    %v1542 = vrot.slane %v1535, 6
    %v1543 = vrot.slane %v1535, 7
    %v1552 = vsub.f32 %v1499, %v1535
    %v1553 = vsub.f32 %v1500, %v1537
    %v1554 = vsub.f32 %v1501, %v1538
    %v1555 = vsub.f32 %v1502, %v1539
    %v1556 = vsub.f32 %v1503, %v1540
    %v1557 = vsub.f32 %v1504, %v1541
    %v1558 = vsub.f32 %v1505, %v1542
    %v1559 = vsub.f32 %v1506, %v1543
    %v1560 = vmul.f32 %v1552, %v1552
    %v1561 = vmul.f32 %v1553, %v1553
    %v1562 = vmul.f32 %v1554, %v1554
    %v1563 = vmul.f32 %v1555, %v1555
    %v1564 = vmul.f32 %v1556, %v1556
    %v1565 = vmul.f32 %v1557, %v1557
    %v1566 = vmul.f32 %v1558, %v1558
    %v1567 = vmul.f32 %v1559, %v1559
    %v1576 = vrot.slane %v1561, 7
    %v1577 = vsel %vm54, %v1576, %v1560
    %v1578 = vrot.slane %v1562, 6
    %v1579 = vsel %vm57, %v1578, %v1577
    %v1580 = vrot.slane %v1563, 5
    %v1581 = vsel %vm60, %v1580, %v1579
    %v1582 = vrot.slane %v1564, 4
    %v1583 = vsel %vm63, %v1582, %v1581
    %v1584 = vrot.slane %v1565, 3
    %v1585 = vsel %vm66, %v1584, %v1583
    %v1586 = vrot.slane %v1566, 2
    %v1587 = vsel %vm69, %v1586, %v1585
    %v1588 = vrot.slane %v1567, 1
    %v1589 = vsel %vm72, %v1588, %v1587
    %1590 = vrot.lane.b32.xlu0 %v1589, 112
    %v1591 = vpop.permute.xlu0 %1590
    %v1593 = vsel %vm75, %v1591, 0.0
    %1594 = vadd.xlane.f32.xlu0 %v1593
    %v1595 = vpop.xlane.xlu0 %1594
    %v1596 = vmul.f32 %v1595, %v113
    %v1597 = vadd.f32 %v1596, 1e-05
    %v1598 = vrsqrt.pop %v1597
    %v1600 = vrot.slane %v1598, 1
    %v1601 = vrot.slane %v1598, 2
    %v1602 = vrot.slane %v1598, 3
    %v1603 = vrot.slane %v1598, 4
    %v1604 = vrot.slane %v1598, 5
    %v1605 = vrot.slane %v1598, 6
    %v1606 = vrot.slane %v1598, 7
    %v1615 = vmul.f32 %v1552, %v1598
    %v1616 = vmul.f32 %v1553, %v1600
    %v1617 = vmul.f32 %v1554, %v1601
    %v1618 = vmul.f32 %v1555, %v1602
    %v1619 = vmul.f32 %v1556, %v1603
    %v1620 = vmul.f32 %v1557, %v1604
    %v1621 = vmul.f32 %v1558, %v1605
    %v1622 = vmul.f32 %v1559, %v1606
    %v1623 = vmul.f32 %v1615, %v208
    %v1624 = vmul.f32 %v1616, %v208
    %v1625 = vmul.f32 %v1617, %v208
    %v1626 = vmul.f32 %v1618, %v208
    %v1627 = vmul.f32 %v1619, %v208
    %v1628 = vmul.f32 %v1620, %v208
    %v1629 = vmul.f32 %v1621, %v208
    %v1630 = vmul.f32 %v1622, %v208
    %v1631 = vadd.f32 %v1623, %v224
    %v1632 = vadd.f32 %v1624, %v224
    %v1633 = vadd.f32 %v1625, %v224
    %v1634 = vadd.f32 %v1626, %v224
    %v1635 = vadd.f32 %v1627, %v224
    %v1636 = vadd.f32 %v1628, %v224
    %v1637 = vadd.f32 %v1629, %v224
    %v1638 = vadd.f32 %v1630, %v224
    %v1647 = vrot.slane %v1632, 7
    %v1648 = vsel %vm54, %v1647, %v1631
    %v1649 = vrot.slane %v1633, 6
    %v1650 = vsel %vm57, %v1649, %v1648
    %v1651 = vrot.slane %v1634, 5
    %v1652 = vsel %vm60, %v1651, %v1650
    %v1653 = vrot.slane %v1635, 4
    %v1654 = vsel %vm63, %v1653, %v1652
    %v1655 = vrot.slane %v1636, 3
    %v1656 = vsel %vm66, %v1655, %v1654
    %v1657 = vrot.slane %v1637, 2
    %v1658 = vsel %vm69, %v1657, %v1656
    %v1659 = vrot.slane %v1638, 1
    %v1660 = vsel %vm72, %v1659, %v1658
    %1661 = vrot.lane.b32.xlu0 %v1660, 96
    %v1662 = vpop.permute.xlu0 %1661
    %1664 = vst.msk [vmem:[#allocation3] sm:$0xff] %vm1497, %v1662
    %v1665 = vld [vmem:[%s1] sm:$0xff]
    %v1666 = vld [vmem:[#allocation3] sm:$0xff]
    %v1667 = vld [vmem:[%s2] sm:$0xff]
    %1669 = vset.pattern.permute.xlu0 0
    %1670 = vperm.xlu0 %1669, %v1667
    %v1671 = vpop.permute.xlu0 %1670
    %vm1673 = vcmask 64512
    %v1675 = vsel %vm1673, %v1665, 0
    %1677 = vmatprep.subr.mxu0 0.0
    %1678 = vmatpush1.msra.mxu0 %v1666
    %1679 = vmatprep.subr.mxu0 0.0
    %1680 = vmatpush1.msra.mxu0 0.0
    %1681 = vmatprep.subr.mxu0 0.0
    %1682 = vmatpush1.msra.mxu0 0.0
    %1683 = vmatprep.subr.mxu0 0.0
    %1684 = vmatpush1.msra.mxu0 0.0
    %1685 = vmatprep.subr.mxu0 0.0
    %1686 = vmatpush1.msra.mxu0 0.0
    %1687 = vmatprep.subr.mxu0 0.0
    %1688 = vmatpush1.msra.mxu0 0.0
    %1689 = vmatprep.subr.mxu0 0.0
    %1690 = vmatpush1.msra.mxu0 0.0
    %1691 = vmatprep.subr.mxu0 0.0
    %1692 = vmatpush1.msra.mxu0 0.0
    %1693 = vmatprep.subr.mxu0 0.0
    %1694 = vmatpush1.msra.mxu0 0.0
    %1695 = vmatprep.subr.mxu0 0.0
    %1696 = vmatpush1.msra.mxu0 0.0
    %1697 = vmatprep.subr.mxu0 0.0
    %1698 = vmatpush1.msra.mxu0 0.0
    %1699 = vmatprep.subr.mxu0 0.0
    %1700 = vmatpush1.msra.mxu0 0.0
    %1701 = vmatprep.subr.mxu0 0.0
    %1702 = vmatpush1.msra.mxu0 0.0
    %1703 = vmatprep.subr.mxu0 0.0
    %1704 = vmatpush1.msra.mxu0 0.0
    %1705 = vmatprep.subr.mxu0 0.0
    %1706 = vmatpush1.msra.mxu0 0.0
    %1707 = vmatprep.subr.mxu0 0.0
    %1708 = vmatpush1.msra.mxu0 0.0
    %1709 = vmatprep.subr.mxu0 0.0
    %1710 = vmatpush1.msra.mxu0 0.0
    %1711 = vmatprep.subr.mxu0 0.0
    %1712 = vmatpush1.msra.mxu0 0.0
    %1713 = vmatprep.subr.mxu0 0.0
    %1714 = vmatpush1.msra.mxu0 0.0
    %1715 = vmatprep.subr.mxu0 0.0
    %1716 = vmatpush1.msra.mxu0 0.0
    %1717 = vmatprep.subr.mxu0 0.0
    %1718 = vmatpush1.msra.mxu0 0.0
    %1719 = vmatprep.subr.mxu0 0.0
    %1720 = vmatpush1.msra.mxu0 0.0
    %1721 = vmatprep.subr.mxu0 0.0
    %1722 = vmatpush1.msra.mxu0 0.0
    %1723 = vmatprep.subr.mxu0 0.0
    %1724 = vmatpush1.msra.mxu0 0.0
    %1725 = vmatprep.subr.mxu0 0.0
    %1726 = vmatpush1.msra.mxu0 0.0
    %1727 = vmatprep.subr.mxu0 0.0
    %1728 = vmatpush1.msra.mxu0 0.0
    %1729 = vmatprep.subr.mxu0 0.0
    %1730 = vmatpush1.msra.mxu0 0.0
    %1731 = vmatprep.subr.mxu0 0.0
    %1732 = vmatpush1.msra.mxu0 0.0
    %1733 = vmatprep.subr.mxu0 0.0
    %1734 = vmatpush1.msra.mxu0 0.0
    %1735 = vmatprep.subr.mxu0 0.0
    %1736 = vmatpush1.msra.mxu0 0.0
    %1737 = vmatprep.subr.mxu0 0.0
    %1738 = vmatpush1.msra.mxu0 0.0
    %1739 = vmatprep.subr.mxu0 0.0
    %1740 = vmatpush1.msra.mxu0 0.0
    %1741 = vmatprep.mubr.f32.mxu0 0.0
    %1742 = vmatmul.mubr.f32.gmra.mrb[0].mxu0 %v1675
    %v1743 = vpop.f32.mrb[0].mxu0
    %v1744 = vadd.f32 %v1671, %v1743
    %v1745 = vpop.f32.mrb[0].mxu0
    %1746 = vdwg.mxu0
    %v1747 = vld [vmem:[#allocation2] sm:$0xff]
    %v1748 = vmul.f32 %v1747, %v1744
    %1749 = vst [vmem:[#allocation7] sm:$0xff] %v1748
    // Predicated region
    $region26: #{tpu_custom_call.1} parent=1 // pred_check
      _
    $region27: #{tpu_custom_call.1} parent=1 // pred_check_branch
      %1751 = sbr.rel (0) target = $region29
    $region28: #{tpu_custom_call.1} parent=1 // pred_region
      %s1753 = ssub.s32 128, 128
      %1754 = vsyncadd [#allocation6], %s1753
      %s1756 = sshll.u32 [#allocation7], 4
      %s1757 = int_to_ptr.vmem [resolvable:$true] %s1756
      %1759 = dma.vmem_to_hbm [thread:$0]  %s1757, 128, %s5, [#allocation6]
    $region29: #{tpu_custom_call.1} parent=1 // pred_fallthru
      _
    // Predicated region
    $region30: #{tpu_custom_call.1} parent=1 // pred_check
      _
    $region31: #{tpu_custom_call.1} parent=1 // pred_check_branch
      %1761 = sbr.rel (0) target = $region33
    $region32: #{tpu_custom_call.1} parent=1 // pred_region
      %1762 = dma.done [#allocation6], 128
    $region33: #{tpu_custom_call.1} parent=1 // pred_fallthru
      _
    %1763 = vsyncpa [#allocation5], 1
    %1764 = vsyncpa [#allocation6], 1

</llo_original>
